<compile_context>
chip_gen: v5e
topology: v5e:2x2
jax: 0.10.0
libtpu: 0.0.40
codegen_flags: <defaults>
</compile_context>

<pallas_src>
import jax
import jax.numpy as jnp
from jax.experimental import pallas as pl
from jax.experimental.pallas import tpu as pltpu

LAYER_DIMS = [112, 100, 300, 200, 77, 2]  # from nn.Sequential in DLAAlarmModel
LANE = 128


def _round_up(x, m):
    return ((x + m - 1) // m) * m


def mlp_kernel(x_ref,
               w1, b1, w2, b2, w3, b3, w4, b4, w5, b5, w6, b6,
               o_ref):
    # x_ref: (tile, Dp) bf16 ; weights bf16 ; biases f32 ; output f32.
    h = x_ref[...]

    def dense(h_bf16, w_ref, b_ref, relu):
        b = b_ref[...]  # read once per layer (hoisted broadcast)
        y = jnp.dot(h_bf16, w_ref[...],
                    preferred_element_type=jnp.float32) + b
        if relu:
            y = jnp.maximum(y, 0.0)
        return y

    h = dense(h, w1, b1, True).astype(jnp.bfloat16)
    h = dense(h, w2, b2, True).astype(jnp.bfloat16)
    h = dense(h, w3, b3, True).astype(jnp.bfloat16)
    h = dense(h, w4, b4, True).astype(jnp.bfloat16)
    h = dense(h, w5, b5, True).astype(jnp.bfloat16)
    h = dense(h, w6, b6, False)          # last layer: no ReLU, keep f32
    o_ref[...] = h.astype(o_ref.dtype)


def dla_alarm_forward(x, params, *, batch_tile=512):
    """x: (B, fc_out_dim) float32. params: list of (W (din,dout), b (1,dout)).
    Returns (B, 2) float32."""
    B, D = x.shape
    out_dim = params[-1][0].shape[1]

    # ---- one-time wrapper-side padding to lane-dense shapes ----------------
    D_p = _round_up(D, LANE)
    padded = []
    for (w, b) in params:
        din, dout = w.shape
        din_p, dout_p = _round_up(din, LANE), _round_up(dout, LANE)
        w_p = jnp.zeros((din_p, dout_p), jnp.bfloat16).at[:din, :dout].set(
            w.astype(jnp.bfloat16))
        b_p = jnp.zeros((1, dout_p), jnp.float32).at[:, :dout].set(
            b.astype(jnp.float32))
        padded.append((w_p, b_p))
    out_dim_p = padded[-1][0].shape[1]

    # ---- batch tiling: multiple of 128, shrunk for small B -----------------
    tile = min(batch_tile, _round_up(B, LANE))
    B_p = _round_up(B, tile)
    x_p = jnp.zeros((B_p, D_p), jnp.bfloat16).at[:B, :D].set(
        x.astype(jnp.bfloat16))

    flat_params = []
    in_specs = [pl.BlockSpec((tile, D_p), lambda i: (i, 0))]
    for (w_p, b_p) in padded:
        flat_params += [w_p, b_p]
        # Constant index_map -> Mosaic keeps these resident across batch tiles.
        in_specs += [pl.BlockSpec(w_p.shape, lambda i: (0, 0)),
                     pl.BlockSpec(b_p.shape, lambda i: (0, 0))]

    out_p = pl.pallas_call(
        mlp_kernel,
        out_shape=jax.ShapeDtypeStruct((B_p, out_dim_p), jnp.float32),
        grid_spec=pltpu.PrefetchScalarGridSpec(
            num_scalar_prefetch=0,
            grid=(B_p // tile,),
            in_specs=in_specs,
            out_specs=pl.BlockSpec((tile, out_dim_p), lambda i: (i, 0)),
        ),
        compiler_params=pltpu.CompilerParams(
            dimension_semantics=("parallel",)),
    )(x_p, *flat_params)

    return out_p[:B, :out_dim]


def init_params(key, fc_out_dim):
    """Deterministic PyTorch-style uniform(-1/sqrt(fan_in), 1/sqrt(fan_in)) init."""
    dims = [fc_out_dim] + LAYER_DIMS
    params = []
    for din, dout in zip(dims[:-1], dims[1:]):
        kw, kb, key = jax.random.split(key, 3)
        bound = 1.0 / (din ** 0.5)
        w = jax.random.uniform(kw, (din, dout), jnp.float32, -bound, bound)
        b = jax.random.uniform(kb, (1, dout), jnp.float32, -bound, bound)
        params.append((w, b))
    return params


def reference_forward(x, params):
    """Pure-JAX reference with the same precision policy (bf16 matmul, f32 acc)."""
    h = x
    for i, (w, b) in enumerate(params):
        h = jnp.dot(h.astype(jnp.bfloat16), w.astype(jnp.bfloat16),
                    preferred_element_type=jnp.float32) + b
        if i < len(params) - 1:
            h = jnp.maximum(h, 0.0)
    return h


if __name__ == "__main__":
    key = jax.random.PRNGKey(0)
    k_in, k_in2, k_param = jax.random.split(key, 3)

    fc_out_dim = 32
    params = init_params(k_param, fc_out_dim)

    # Small case (single grid step).
    batch = 8
    x = jax.random.normal(k_in, (batch, fc_out_dim), dtype=jnp.float32)
    out = jax.block_until_ready(dla_alarm_forward(x, params))
    ref = reference_forward(x, params)
    assert out.shape == (batch, 2), out.shape
    assert jnp.allclose(out, ref, atol=1e-2, rtol=1e-2), (
        float(jnp.max(jnp.abs(out - ref))))

    # Multi-tile case: B not a multiple of the tile, >1 grid step.
    batch2 = 300
    x2 = jax.random.normal(k_in2, (batch2, fc_out_dim), dtype=jnp.float32)
    out2 = jax.block_until_ready(dla_alarm_forward(x2, params, batch_tile=128))
    ref2 = reference_forward(x2, params)
    assert out2.shape == (batch2, 2), out2.shape
    assert jnp.allclose(out2, ref2, atol=1e-2, rtol=1e-2), (
        float(jnp.max(jnp.abs(out2 - ref2))))

    print("KERNEL_OK")
</pallas_src>

<mosaic_0001>
module attributes {stable_mosaic.version = 11 : i64} {
  func.func @mlp_kernel(%arg0: i32, %arg1: memref<128x128xbf16, #tpu.memory_space<vmem>>, %arg2: memref<128x128xbf16, #tpu.memory_space<vmem>>, %arg3: memref<1x128xf32, #tpu.memory_space<vmem>>, %arg4: memref<128x128xbf16, #tpu.memory_space<vmem>>, %arg5: memref<1x128xf32, #tpu.memory_space<vmem>>, %arg6: memref<128x384xbf16, #tpu.memory_space<vmem>>, %arg7: memref<1x384xf32, #tpu.memory_space<vmem>>, %arg8: memref<384x256xbf16, #tpu.memory_space<vmem>>, %arg9: memref<1x256xf32, #tpu.memory_space<vmem>>, %arg10: memref<256x128xbf16, #tpu.memory_space<vmem>>, %arg11: memref<1x128xf32, #tpu.memory_space<vmem>>, %arg12: memref<128x128xbf16, #tpu.memory_space<vmem>>, %arg13: memref<1x128xf32, #tpu.memory_space<vmem>>, %arg14: memref<128x128xf32, #tpu.memory_space<vmem>>) attributes {dimension_semantics = [#tpu.dimension_semantics<parallel>], iteration_bounds = array<i64: 1>, scalar_prefetch = 0 : i64, scratch_operands = 0 : i64, tpu.core_type = #tpu.core_type<tc>, window_params = [{transform_indices = @transform_0, window_bounds = array<i64: 128, 128>}, {pipeline_mode = #tpu.pipeline_mode<synchronous>, transform_indices = @transform_1, window_bounds = array<i64: 128, 128>}, {pipeline_mode = #tpu.pipeline_mode<synchronous>, transform_indices = @transform_2, window_bounds = array<i64: 1, 128>}, {pipeline_mode = #tpu.pipeline_mode<synchronous>, transform_indices = @transform_3, window_bounds = array<i64: 128, 128>}, {pipeline_mode = #tpu.pipeline_mode<synchronous>, transform_indices = @transform_4, window_bounds = array<i64: 1, 128>}, {pipeline_mode = #tpu.pipeline_mode<synchronous>, transform_indices = @transform_5, window_bounds = array<i64: 128, 384>}, {pipeline_mode = #tpu.pipeline_mode<synchronous>, transform_indices = @transform_6, window_bounds = array<i64: 1, 384>}, {pipeline_mode = #tpu.pipeline_mode<synchronous>, transform_indices = @transform_7, window_bounds = array<i64: 384, 256>}, {pipeline_mode = #tpu.pipeline_mode<synchronous>, transform_indices = @transform_8, window_bounds = array<i64: 1, 256>}, {pipeline_mode = #tpu.pipeline_mode<synchronous>, transform_indices = @transform_9, window_bounds = array<i64: 256, 128>}, {pipeline_mode = #tpu.pipeline_mode<synchronous>, transform_indices = @transform_10, window_bounds = array<i64: 1, 128>}, {pipeline_mode = #tpu.pipeline_mode<synchronous>, transform_indices = @transform_11, window_bounds = array<i64: 128, 128>}, {pipeline_mode = #tpu.pipeline_mode<synchronous>, transform_indices = @transform_12, window_bounds = array<i64: 1, 128>}, {transform_indices = @transform_13, window_bounds = array<i64: 128, 128>}]} {
    %c0 = arith.constant 0 : index
    %c0_0 = arith.constant 0 : index
    %0 = vector.load %arg1[%c0, %c0_0] : memref<128x128xbf16, #tpu.memory_space<vmem>>, vector<128x128xbf16>
    %c0_1 = arith.constant 0 : index
    %c0_2 = arith.constant 0 : index
    %1 = vector.load %arg3[%c0_1, %c0_2] : memref<1x128xf32, #tpu.memory_space<vmem>>, vector<1x128xf32>
    %c0_3 = arith.constant 0 : index
    %c0_4 = arith.constant 0 : index
    %2 = vector.load %arg2[%c0_3, %c0_4] : memref<128x128xbf16, #tpu.memory_space<vmem>>, vector<128x128xbf16>
    %cst = arith.constant dense<0.000000e+00> : vector<128x128xf32>
    %3 = tpu.matmul %0, %2, %cst {dimension_numbers = #tpu.dot_dimension_numbers<[1], [0], [0], [1], [0, 0, 1, 1], [], []>} : vector<128x128xbf16>, vector<128x128xbf16>, vector<128x128xf32> -> vector<128x128xf32>
    %4 = vector.broadcast %1 : vector<1x128xf32> to vector<128x128xf32>
    %5 = arith.addf %3, %4 : vector<128x128xf32>
    %cst_5 = arith.constant 0.000000e+00 : f32
    %6 = vector.broadcast %cst_5 : f32 to vector<128x128xf32>
    %7 = arith.maximumf %5, %6 : vector<128x128xf32>
    %8 = arith.truncf %7 : vector<128x128xf32> to vector<128x128xbf16>
    %c0_6 = arith.constant 0 : index
    %c0_7 = arith.constant 0 : index
    %9 = vector.load %arg5[%c0_6, %c0_7] : memref<1x128xf32, #tpu.memory_space<vmem>>, vector<1x128xf32>
    %c0_8 = arith.constant 0 : index
    %c0_9 = arith.constant 0 : index
    %10 = vector.load %arg4[%c0_8, %c0_9] : memref<128x128xbf16, #tpu.memory_space<vmem>>, vector<128x128xbf16>
    %cst_10 = arith.constant dense<0.000000e+00> : vector<128x128xf32>
    %11 = tpu.matmul %8, %10, %cst_10 {dimension_numbers = #tpu.dot_dimension_numbers<[1], [0], [0], [1], [0, 0, 1, 1], [], []>} : vector<128x128xbf16>, vector<128x128xbf16>, vector<128x128xf32> -> vector<128x128xf32>
    %12 = vector.broadcast %9 : vector<1x128xf32> to vector<128x128xf32>
    %13 = arith.addf %11, %12 : vector<128x128xf32>
    %cst_11 = arith.constant 0.000000e+00 : f32
    %14 = vector.broadcast %cst_11 : f32 to vector<128x128xf32>
    %15 = arith.maximumf %13, %14 : vector<128x128xf32>
    %16 = arith.truncf %15 : vector<128x128xf32> to vector<128x128xbf16>
    %c0_12 = arith.constant 0 : index
    %c0_13 = arith.constant 0 : index
    %17 = vector.load %arg7[%c0_12, %c0_13] : memref<1x384xf32, #tpu.memory_space<vmem>>, vector<1x384xf32>
    %c0_14 = arith.constant 0 : index
    %c0_15 = arith.constant 0 : index
    %18 = vector.load %arg6[%c0_14, %c0_15] : memref<128x384xbf16, #tpu.memory_space<vmem>>, vector<128x384xbf16>
    %cst_16 = arith.constant dense<0.000000e+00> : vector<128x384xf32>
    %19 = tpu.matmul %16, %18, %cst_16 {dimension_numbers = #tpu.dot_dimension_numbers<[1], [0], [0], [1], [0, 0, 1, 1], [], []>} : vector<128x128xbf16>, vector<128x384xbf16>, vector<128x384xf32> -> vector<128x384xf32>
    %20 = vector.broadcast %17 : vector<1x384xf32> to vector<128x384xf32>
    %21 = arith.addf %19, %20 : vector<128x384xf32>
    %cst_17 = arith.constant 0.000000e+00 : f32
    %22 = vector.broadcast %cst_17 : f32 to vector<128x384xf32>
    %23 = arith.maximumf %21, %22 : vector<128x384xf32>
    %24 = arith.truncf %23 : vector<128x384xf32> to vector<128x384xbf16>
    %c0_18 = arith.constant 0 : index
    %c0_19 = arith.constant 0 : index
    %25 = vector.load %arg9[%c0_18, %c0_19] : memref<1x256xf32, #tpu.memory_space<vmem>>, vector<1x256xf32>
    %c0_20 = arith.constant 0 : index
    %c0_21 = arith.constant 0 : index
    %26 = vector.load %arg8[%c0_20, %c0_21] : memref<384x256xbf16, #tpu.memory_space<vmem>>, vector<384x256xbf16>
    %cst_22 = arith.constant dense<0.000000e+00> : vector<128x256xf32>
    %27 = tpu.matmul %24, %26, %cst_22 {dimension_numbers = #tpu.dot_dimension_numbers<[1], [0], [0], [1], [0, 0, 1, 1], [], []>} : vector<128x384xbf16>, vector<384x256xbf16>, vector<128x256xf32> -> vector<128x256xf32>
    %28 = vector.broadcast %25 : vector<1x256xf32> to vector<128x256xf32>
    %29 = arith.addf %27, %28 : vector<128x256xf32>
    %cst_23 = arith.constant 0.000000e+00 : f32
    %30 = vector.broadcast %cst_23 : f32 to vector<128x256xf32>
    %31 = arith.maximumf %29, %30 : vector<128x256xf32>
    %32 = arith.truncf %31 : vector<128x256xf32> to vector<128x256xbf16>
    %c0_24 = arith.constant 0 : index
    %c0_25 = arith.constant 0 : index
    %33 = vector.load %arg11[%c0_24, %c0_25] : memref<1x128xf32, #tpu.memory_space<vmem>>, vector<1x128xf32>
    %c0_26 = arith.constant 0 : index
    %c0_27 = arith.constant 0 : index
    %34 = vector.load %arg10[%c0_26, %c0_27] : memref<256x128xbf16, #tpu.memory_space<vmem>>, vector<256x128xbf16>
    %cst_28 = arith.constant dense<0.000000e+00> : vector<128x128xf32>
    %35 = tpu.matmul %32, %34, %cst_28 {dimension_numbers = #tpu.dot_dimension_numbers<[1], [0], [0], [1], [0, 0, 1, 1], [], []>} : vector<128x256xbf16>, vector<256x128xbf16>, vector<128x128xf32> -> vector<128x128xf32>
    %36 = vector.broadcast %33 : vector<1x128xf32> to vector<128x128xf32>
    %37 = arith.addf %35, %36 : vector<128x128xf32>
    %cst_29 = arith.constant 0.000000e+00 : f32
    %38 = vector.broadcast %cst_29 : f32 to vector<128x128xf32>
    %39 = arith.maximumf %37, %38 : vector<128x128xf32>
    %40 = arith.truncf %39 : vector<128x128xf32> to vector<128x128xbf16>
    %c0_30 = arith.constant 0 : index
    %c0_31 = arith.constant 0 : index
    %41 = vector.load %arg13[%c0_30, %c0_31] : memref<1x128xf32, #tpu.memory_space<vmem>>, vector<1x128xf32>
    %c0_32 = arith.constant 0 : index
    %c0_33 = arith.constant 0 : index
    %42 = vector.load %arg12[%c0_32, %c0_33] : memref<128x128xbf16, #tpu.memory_space<vmem>>, vector<128x128xbf16>
    %cst_34 = arith.constant dense<0.000000e+00> : vector<128x128xf32>
    %43 = tpu.matmul %40, %42, %cst_34 {dimension_numbers = #tpu.dot_dimension_numbers<[1], [0], [0], [1], [0, 0, 1, 1], [], []>} : vector<128x128xbf16>, vector<128x128xbf16>, vector<128x128xf32> -> vector<128x128xf32>
    %44 = vector.broadcast %41 : vector<1x128xf32> to vector<128x128xf32>
    %45 = arith.addf %43, %44 : vector<128x128xf32>
    %c0_35 = arith.constant 0 : index
    %c0_36 = arith.constant 0 : index
    %46 = vector.load %arg14[%c0_35, %c0_36] : memref<128x128xf32, #tpu.memory_space<vmem>>, vector<128x128xf32>
    tpu.vector_store %arg14[%c0_35, %c0_36], %45 {strides = array<i32>} : memref<128x128xf32, #tpu.memory_space<vmem>>, vector<128x128xf32>,
    return
  }
  func.func @transform_0(%arg0: i32) -> (i32, i32) {
    %c0_i32 = arith.constant 0 : i32
    %c0_i32_0 = arith.constant 0 : i32
    return %arg0, %c0_i32 : i32, i32
  }
  func.func @transform_1(%arg0: i32) -> (i32, i32) {
    %c0_i32 = arith.constant 0 : i32
    %c0_i32_0 = arith.constant 0 : i32
    %c0_i32_1 = arith.constant 0 : i32
    return %c0_i32, %c0_i32_0 : i32, i32
  }
  func.func @transform_2(%arg0: i32) -> (i32, i32) {
    %c0_i32 = arith.constant 0 : i32
    %c0_i32_0 = arith.constant 0 : i32
    %c0_i32_1 = arith.constant 0 : i32
    return %c0_i32, %c0_i32_0 : i32, i32
  }
  func.func @transform_3(%arg0: i32) -> (i32, i32) {
    %c0_i32 = arith.constant 0 : i32
    %c0_i32_0 = arith.constant 0 : i32
    %c0_i32_1 = arith.constant 0 : i32
    return %c0_i32, %c0_i32_0 : i32, i32
  }
  func.func @transform_4(%arg0: i32) -> (i32, i32) {
    %c0_i32 = arith.constant 0 : i32
    %c0_i32_0 = arith.constant 0 : i32
    %c0_i32_1 = arith.constant 0 : i32
    return %c0_i32, %c0_i32_0 : i32, i32
  }
  func.func @transform_5(%arg0: i32) -> (i32, i32) {
    %c0_i32 = arith.constant 0 : i32
    %c0_i32_0 = arith.constant 0 : i32
    %c0_i32_1 = arith.constant 0 : i32
    return %c0_i32, %c0_i32_0 : i32, i32
  }
  func.func @transform_6(%arg0: i32) -> (i32, i32) {
    %c0_i32 = arith.constant 0 : i32
    %c0_i32_0 = arith.constant 0 : i32
    %c0_i32_1 = arith.constant 0 : i32
    return %c0_i32, %c0_i32_0 : i32, i32
  }
  func.func @transform_7(%arg0: i32) -> (i32, i32) {
    %c0_i32 = arith.constant 0 : i32
    %c0_i32_0 = arith.constant 0 : i32
    %c0_i32_1 = arith.constant 0 : i32
    return %c0_i32, %c0_i32_0 : i32, i32
  }
  func.func @transform_8(%arg0: i32) -> (i32, i32) {
    %c0_i32 = arith.constant 0 : i32
    %c0_i32_0 = arith.constant 0 : i32
    %c0_i32_1 = arith.constant 0 : i32
    return %c0_i32, %c0_i32_0 : i32, i32
  }
  func.func @transform_9(%arg0: i32) -> (i32, i32) {
    %c0_i32 = arith.constant 0 : i32
    %c0_i32_0 = arith.constant 0 : i32
    %c0_i32_1 = arith.constant 0 : i32
    return %c0_i32, %c0_i32_0 : i32, i32
  }
  func.func @transform_10(%arg0: i32) -> (i32, i32) {
    %c0_i32 = arith.constant 0 : i32
    %c0_i32_0 = arith.constant 0 : i32
    %c0_i32_1 = arith.constant 0 : i32
    return %c0_i32, %c0_i32_0 : i32, i32
  }
  func.func @transform_11(%arg0: i32) -> (i32, i32) {
    %c0_i32 = arith.constant 0 : i32
    %c0_i32_0 = arith.constant 0 : i32
    %c0_i32_1 = arith.constant 0 : i32
    return %c0_i32, %c0_i32_0 : i32, i32
  }
  func.func @transform_12(%arg0: i32) -> (i32, i32) {
    %c0_i32 = arith.constant 0 : i32
    %c0_i32_0 = arith.constant 0 : i32
    %c0_i32_1 = arith.constant 0 : i32
    return %c0_i32, %c0_i32_0 : i32, i32
  }
  func.func @transform_13(%arg0: i32) -> (i32, i32) {
    %c0_i32 = arith.constant 0 : i32
    %c0_i32_0 = arith.constant 0 : i32
    return %arg0, %c0_i32 : i32, i32
  }
}

</mosaic_0001>

<llo_original>
// kernel: tpu_custom_call.1
$region0: #{tpu_custom_call.1}
  #allocation0 [shape = 'u32[]', space=smem, size = 0x4, offset = 0x4, fixed_abs, tag = 'smem constant byte address 0x4 - core index']
  #allocation1 [shape = 'u32[72,128]{1,0:T(1,128)}', space=vmem, size = 0x9000, scoped, tag = 'internal scratch']
  %s0 = inlined_call_operand.hbm [shape: bf16[128,128], index: 0, kind: input, shape index: {}]
  %s1 = inlined_call_operand.hbm [shape: bf16[128,128], index: 1, kind: input, shape index: {}]
  %s2 = inlined_call_operand.hbm [shape: f32[1,128], index: 2, kind: input, shape index: {}]
  %s3 = inlined_call_operand.hbm [shape: bf16[128,128], index: 3, kind: input, shape index: {}]
  %s4 = inlined_call_operand.hbm [shape: f32[1,128], index: 4, kind: input, shape index: {}]
  %s5 = inlined_call_operand.hbm [shape: bf16[128,384], index: 5, kind: input, shape index: {}]
  %s6 = inlined_call_operand.vmem [shape: f32[1,384], index: 6, kind: input, shape index: {}]
  %s7 = inlined_call_operand.hbm [shape: bf16[384,256], index: 7, kind: input, shape index: {}]
  %s8 = inlined_call_operand.vmem [shape: f32[1,256], index: 8, kind: input, shape index: {}]
  %s9 = inlined_call_operand.hbm [shape: bf16[256,128], index: 9, kind: input, shape index: {}]
  %s10 = inlined_call_operand.vmem [shape: f32[1,128], index: 10, kind: input, shape index: {}]
  %s11 = inlined_call_operand.hbm [shape: bf16[128,128], index: 11, kind: input, shape index: {}]
  %s12 = inlined_call_operand.vmem [shape: f32[1,128], index: 12, kind: input, shape index: {}]
  %s13 = inlined_call_operand.hbm [shape: f32[128,128], index: 13, kind: output, shape index: {}]
  %s14 = sld [smem:[#allocation0]]
  $region98: #{tpu_custom_call.1} parent=0
    _
  %s16 = ssub.s32 1, %s14
  %s17 = scalar_select 0, %s16, %s14
  $region1: #{tpu_custom_call.1} parent=0
    #allocation2 [shape = 'u8[32768]{0}', space=vmem, size = 0x8000, scoped, tag = 'input window, operand 0, single buffered']
    #allocation3 [shape = 's32[1]{0}', space=sflag, size = 0x4, scoped, tag = 'scoped memory for tpu_custom_call.1']
    #allocation4 [shape = 's32[1]{0}', space=sflag, size = 0x4, scoped, tag = 'scoped memory for tpu_custom_call.1']
    #allocation5 [shape = 'u8[32768]{0}', space=vmem, size = 0x8000, scoped, tag = 'input window, operand 1, single buffered']
    #allocation6 [shape = 's32[1]{0}', space=sflag, size = 0x4, scoped, tag = 'scoped memory for tpu_custom_call.1']
    #allocation7 [shape = 'u8[512]{0}', space=vmem, size = 0x400, scoped, tag = 'input window, operand 2, single buffered']
    #allocation8 [shape = 'u8[32768]{0}', space=vmem, size = 0x8000, scoped, tag = 'input window, operand 3, single buffered']
    #allocation9 [shape = 's32[1]{0}', space=sflag, size = 0x4, scoped, tag = 'scoped memory for tpu_custom_call.1']
    #allocation10 [shape = 'u8[512]{0}', space=vmem, size = 0x400, scoped, tag = 'input window, operand 4, single buffered']
    #allocation11 [shape = 'u8[98304]{0}', space=vmem, size = 0x18000, scoped, tag = 'input window, operand 5, single buffered']
    #allocation12 [shape = 's32[1]{0}', space=sflag, size = 0x4, scoped, tag = 'scoped memory for tpu_custom_call.1']
    #allocation13 [shape = 'u8[196608]{0}', space=vmem, size = 0x30000, scoped, tag = 'input window, operand 7, single buffered']
    #allocation14 [shape = 'u8[65536]{0}', space=vmem, size = 0x10000, scoped, tag = 'input window, operand 9, single buffered']
    #allocation15 [shape = 's32[1]{0}', space=sflag, size = 0x4, scoped, tag = 'scoped memory for tpu_custom_call.1']
    #allocation16 [shape = 'u8[32768]{0}', space=vmem, size = 0x8000, scoped, tag = 'input window, operand 11, single buffered']
    #allocation17 [shape = 'u8[65536]{0}', space=vmem, size = 0x10000, scoped, tag = 'output window, operand 0, single buffered']
    %18 = vsyncpa [#allocation3], 0
    %19 = vsyncpa [#allocation6], 0
    %20 = vsyncpa [#allocation9], 0
    %21 = vsyncpa [#allocation12], 0
    %22 = vsyncpa [#allocation15], 0
    %23 = vsyncpa [#allocation4], 0
    // Predicated region
    $region2: #{tpu_custom_call.1} parent=1 // pred_check
      _
    $region3: #{tpu_custom_call.1} parent=1 // pred_check_branch
      %25 = sbr.rel (0) target = $region5
    $region4: #{tpu_custom_call.1} parent=1 // pred_region
      %27 = vsyncadd [#allocation3], 0
      %s28 = sshll.u32 %s0, 4
      %s29 = int_to_ptr.hbm [resolvable:$true] %s28
      %s30 = sshll.u32 [#allocation2], 4
      %s31 = int_to_ptr.vmem [resolvable:$true] %s30
      %36 = dma.hbm_to_vmem [thread:$0]  %s29, 1024, %s31, [#allocation3], 64, 64, 4
    $region5: #{tpu_custom_call.1} parent=1 // pred_fallthru
      _
    // Predicated region
    $region6: #{tpu_custom_call.1} parent=1 // pred_check
      _
    $region7: #{tpu_custom_call.1} parent=1 // pred_check_branch
      %38 = sbr.rel (0) target = $region9
    $region8: #{tpu_custom_call.1} parent=1 // pred_region
      %40 = vsyncadd [#allocation6], 0
      %s41 = sshll.u32 %s1, 4
      %s42 = int_to_ptr.hbm [resolvable:$true] %s41
      %s43 = sshll.u32 [#allocation5], 4
      %s44 = int_to_ptr.vmem [resolvable:$true] %s43
      %49 = dma.hbm_to_vmem [thread:$0]  %s42, 1024, %s44, [#allocation6], 64, 64, 4
    $region9: #{tpu_custom_call.1} parent=1 // pred_fallthru
      _
    // Predicated region
    $region10: #{tpu_custom_call.1} parent=1 // pred_check
      _
    $region11: #{tpu_custom_call.1} parent=1 // pred_check_branch
      %51 = sbr.rel (0) target = $region13
    $region12: #{tpu_custom_call.1} parent=1 // pred_region
      %53 = vsyncadd [#allocation6], 0
      %s55 = sshll.u32 %s2, 4
      %s56 = int_to_ptr.hbm [resolvable:$true] %s55
      %s57 = sshll.u32 [#allocation7], 4
      %s58 = int_to_ptr.vmem [resolvable:$true] %s57
      %60 = dma.hbm_to_vmem [thread:$0]  %s56, 16, %s58, [#allocation6]
    $region13: #{tpu_custom_call.1} parent=1 // pred_fallthru
      _
    // Predicated region
    $region14: #{tpu_custom_call.1} parent=1 // pred_check
      _
    $region15: #{tpu_custom_call.1} parent=1 // pred_check_branch
      %62 = sbr.rel (0) target = $region17
    $region16: #{tpu_custom_call.1} parent=1 // pred_region
      %64 = vsyncadd [#allocation9], 0
      %s65 = sshll.u32 %s3, 4
      %s66 = int_to_ptr.hbm [resolvable:$true] %s65
      %s67 = sshll.u32 [#allocation8], 4
      %s68 = int_to_ptr.vmem [resolvable:$true] %s67
      %73 = dma.hbm_to_vmem [thread:$0]  %s66, 1024, %s68, [#allocation9], 64, 64, 4
    $region17: #{tpu_custom_call.1} parent=1 // pred_fallthru
      _
    // Predicated region
    $region18: #{tpu_custom_call.1} parent=1 // pred_check
      _
    $region19: #{tpu_custom_call.1} parent=1 // pred_check_branch
      %75 = sbr.rel (0) target = $region21
    $region20: #{tpu_custom_call.1} parent=1 // pred_region
      %77 = vsyncadd [#allocation9], 0
      %s79 = sshll.u32 %s4, 4
      %s80 = int_to_ptr.hbm [resolvable:$true] %s79
      %s81 = sshll.u32 [#allocation10], 4
      %s82 = int_to_ptr.vmem [resolvable:$true] %s81
      %84 = dma.hbm_to_vmem [thread:$0]  %s80, 16, %s82, [#allocation9]
    $region21: #{tpu_custom_call.1} parent=1 // pred_fallthru
      _
    // Predicated region
    $region22: #{tpu_custom_call.1} parent=1 // pred_check
      _
    $region23: #{tpu_custom_call.1} parent=1 // pred_check_branch
      %86 = sbr.rel (0) target = $region25
    $region24: #{tpu_custom_call.1} parent=1 // pred_region
      %88 = vsyncadd [#allocation12], 0
      %s89 = sshll.u32 %s5, 4
      %s90 = int_to_ptr.hbm [resolvable:$true] %s89
      %s91 = sshll.u32 [#allocation11], 4
      %s92 = int_to_ptr.vmem [resolvable:$true] %s91
      %97 = dma.hbm_to_vmem [thread:$0]  %s90, 3072, %s92, [#allocation12], 192, 192, 12
    $region25: #{tpu_custom_call.1} parent=1 // pred_fallthru
      _
    // Predicated region
    $region26: #{tpu_custom_call.1} parent=1 // pred_check
      _
    $region27: #{tpu_custom_call.1} parent=1 // pred_check_branch
      %99 = sbr.rel (0) target = $region29
    $region28: #{tpu_custom_call.1} parent=1 // pred_region
      _
    $region29: #{tpu_custom_call.1} parent=1 // pred_fallthru
      _
    // Predicated region
    $region30: #{tpu_custom_call.1} parent=1 // pred_check
      _
    $region31: #{tpu_custom_call.1} parent=1 // pred_check_branch
      %101 = sbr.rel (0) target = $region33
    $region32: #{tpu_custom_call.1} parent=1 // pred_region
      %103 = vsyncadd [#allocation12], 0
      %s104 = sshll.u32 %s7, 4
      %s105 = int_to_ptr.hbm [resolvable:$true] %s104
      %s106 = sshll.u32 [#allocation13], 4
      %s107 = int_to_ptr.vmem [resolvable:$true] %s106
      %112 = dma.hbm_to_vmem [thread:$0]  %s105, 6144, %s107, [#allocation12], 128, 128, 8
    $region33: #{tpu_custom_call.1} parent=1 // pred_fallthru
      _
    // Predicated region
    $region34: #{tpu_custom_call.1} parent=1 // pred_check
      _
    $region35: #{tpu_custom_call.1} parent=1 // pred_check_branch
      %114 = sbr.rel (0) target = $region37
    $region36: #{tpu_custom_call.1} parent=1 // pred_region
      _
    $region37: #{tpu_custom_call.1} parent=1 // pred_fallthru
      _
    // Predicated region
    $region38: #{tpu_custom_call.1} parent=1 // pred_check
      _
    $region39: #{tpu_custom_call.1} parent=1 // pred_check_branch
      %116 = sbr.rel (0) target = $region41
    $region40: #{tpu_custom_call.1} parent=1 // pred_region
      %118 = vsyncadd [#allocation15], 0
      %s119 = sshll.u32 %s9, 4
      %s120 = int_to_ptr.hbm [resolvable:$true] %s119
      %s121 = sshll.u32 [#allocation14], 4
      %s122 = int_to_ptr.vmem [resolvable:$true] %s121
      %127 = dma.hbm_to_vmem [thread:$0]  %s120, 2048, %s122, [#allocation15], 64, 64, 4
    $region41: #{tpu_custom_call.1} parent=1 // pred_fallthru
      _
    // Predicated region
    $region42: #{tpu_custom_call.1} parent=1 // pred_check
      _
    $region43: #{tpu_custom_call.1} parent=1 // pred_check_branch
      %129 = sbr.rel (0) target = $region45
    $region44: #{tpu_custom_call.1} parent=1 // pred_region
      _
    $region45: #{tpu_custom_call.1} parent=1 // pred_fallthru
      _
    // Predicated region
    $region46: #{tpu_custom_call.1} parent=1 // pred_check
      _
    $region47: #{tpu_custom_call.1} parent=1 // pred_check_branch
      %131 = sbr.rel (0) target = $region49
    $region48: #{tpu_custom_call.1} parent=1 // pred_region
      %133 = vsyncadd [#allocation15], 0
      %s134 = sshll.u32 %s11, 4
      %s135 = int_to_ptr.hbm [resolvable:$true] %s134
      %s136 = sshll.u32 [#allocation16], 4
      %s137 = int_to_ptr.vmem [resolvable:$true] %s136
      %142 = dma.hbm_to_vmem [thread:$0]  %s135, 1024, %s137, [#allocation15], 64, 64, 4
    $region49: #{tpu_custom_call.1} parent=1 // pred_fallthru
      _
    // Predicated region
    $region50: #{tpu_custom_call.1} parent=1 // pred_check
      _
    $region51: #{tpu_custom_call.1} parent=1 // pred_check_branch
      %144 = sbr.rel (0) target = $region53
    $region52: #{tpu_custom_call.1} parent=1 // pred_region
      _
    $region53: #{tpu_custom_call.1} parent=1 // pred_fallthru
      _
    // Predicated region
    $region54: #{tpu_custom_call.1} parent=1 // pred_check
      _
    $region55: #{tpu_custom_call.1} parent=1 // pred_check_branch
      %146 = sbr.rel (0) target = $region57
    $region56: #{tpu_custom_call.1} parent=1 // pred_region
      %148 = dma.done [#allocation3], 1024
    $region57: #{tpu_custom_call.1} parent=1 // pred_fallthru
      _
    // Predicated region
    $region58: #{tpu_custom_call.1} parent=1 // pred_check
      _
    $region59: #{tpu_custom_call.1} parent=1 // pred_check_branch
      %150 = sbr.rel (0) target = $region61
    $region60: #{tpu_custom_call.1} parent=1 // pred_region
      %152 = dma.done [#allocation6], 1024
    $region61: #{tpu_custom_call.1} parent=1 // pred_fallthru
      _
    // Predicated region
    $region62: #{tpu_custom_call.1} parent=1 // pred_check
      _
    $region63: #{tpu_custom_call.1} parent=1 // pred_check_branch
      %154 = sbr.rel (0) target = $region65
    $region64: #{tpu_custom_call.1} parent=1 // pred_region
      %156 = dma.done [#allocation6], 16
    $region65: #{tpu_custom_call.1} parent=1 // pred_fallthru
      _
    // Predicated region
    $region66: #{tpu_custom_call.1} parent=1 // pred_check
      _
    $region67: #{tpu_custom_call.1} parent=1 // pred_check_branch
      %158 = sbr.rel (0) target = $region69
    $region68: #{tpu_custom_call.1} parent=1 // pred_region
      %160 = dma.done [#allocation9], 1024
    $region69: #{tpu_custom_call.1} parent=1 // pred_fallthru
      _
    // Predicated region
    $region70: #{tpu_custom_call.1} parent=1 // pred_check
      _
    $region71: #{tpu_custom_call.1} parent=1 // pred_check_branch
      %162 = sbr.rel (0) target = $region73
    $region72: #{tpu_custom_call.1} parent=1 // pred_region
      %164 = dma.done [#allocation9], 16
    $region73: #{tpu_custom_call.1} parent=1 // pred_fallthru
      _
    // Predicated region
    $region74: #{tpu_custom_call.1} parent=1 // pred_check
      _
    $region75: #{tpu_custom_call.1} parent=1 // pred_check_branch
      %166 = sbr.rel (0) target = $region77
    $region76: #{tpu_custom_call.1} parent=1 // pred_region
      %168 = dma.done [#allocation12], 3072
    $region77: #{tpu_custom_call.1} parent=1 // pred_fallthru
      _
    // Predicated region
    $region78: #{tpu_custom_call.1} parent=1 // pred_check
      _
    $region79: #{tpu_custom_call.1} parent=1 // pred_check_branch
      %170 = sbr.rel (0) target = $region81
    $region80: #{tpu_custom_call.1} parent=1 // pred_region
      %172 = dma.done [#allocation12], 6144
    $region81: #{tpu_custom_call.1} parent=1 // pred_fallthru
      _
    // Predicated region
    $region82: #{tpu_custom_call.1} parent=1 // pred_check
      _
    $region83: #{tpu_custom_call.1} parent=1 // pred_check_branch
      %174 = sbr.rel (0) target = $region85
    $region84: #{tpu_custom_call.1} parent=1 // pred_region
      %176 = dma.done [#allocation15], 2048
    $region85: #{tpu_custom_call.1} parent=1 // pred_fallthru
      _
    // Predicated region
    $region86: #{tpu_custom_call.1} parent=1 // pred_check
      _
    $region87: #{tpu_custom_call.1} parent=1 // pred_check_branch
      %178 = sbr.rel (0) target = $region89
    $region88: #{tpu_custom_call.1} parent=1 // pred_region
      %180 = dma.done [#allocation15], 1024
    $region89: #{tpu_custom_call.1} parent=1 // pred_fallthru
      _
    %v181 = vld [vmem:[#allocation2] sm:$0xf]
    %v182 = vld [vmem:[#allocation2 + $0x4] sm:$0xf]
    %v183 = vld [vmem:[#allocation2 + $0x8] sm:$0xf]
    %v184 = vld [vmem:[#allocation2 + $0xc] sm:$0xf]
    %v185 = vld [vmem:[#allocation2 + $0x10] sm:$0xf]
    %v186 = vld [vmem:[#allocation2 + $0x14] sm:$0xf]
    %v187 = vld [vmem:[#allocation2 + $0x18] sm:$0xf]
    %v188 = vld [vmem:[#allocation2 + $0x1c] sm:$0xf]
    %v189 = vld [vmem:[#allocation2 + $0x20] sm:$0xf]
    %v190 = vld [vmem:[#allocation2 + $0x24] sm:$0xf]
    %v191 = vld [vmem:[#allocation2 + $0x28] sm:$0xf]
    %v192 = vld [vmem:[#allocation2 + $0x2c] sm:$0xf]
    %v193 = vld [vmem:[#allocation2 + $0x30] sm:$0xf]
    %v194 = vld [vmem:[#allocation2 + $0x34] sm:$0xf]
    %v195 = vld [vmem:[#allocation2 + $0x38] sm:$0xf]
    %v196 = vld [vmem:[#allocation2 + $0x3c] sm:$0xf]
    %v197 = vld [vmem:[#allocation7] sm:$0x1]
    %v198 = vld [vmem:[#allocation5] sm:$0xf]
    %v199 = vld [vmem:[#allocation5 + $0x4] sm:$0xf]
    %v200 = vld [vmem:[#allocation5 + $0x8] sm:$0xf]
    %v201 = vld [vmem:[#allocation5 + $0xc] sm:$0xf]
    %v202 = vld [vmem:[#allocation5 + $0x10] sm:$0xf]
    %v203 = vld [vmem:[#allocation5 + $0x14] sm:$0xf]
    %v204 = vld [vmem:[#allocation5 + $0x18] sm:$0xf]
    %v205 = vld [vmem:[#allocation5 + $0x1c] sm:$0xf]
    %v206 = vld [vmem:[#allocation5 + $0x20] sm:$0xf]
    %v207 = vld [vmem:[#allocation5 + $0x24] sm:$0xf]
    %v208 = vld [vmem:[#allocation5 + $0x28] sm:$0xf]
    %v209 = vld [vmem:[#allocation5 + $0x2c] sm:$0xf]
    %v210 = vld [vmem:[#allocation5 + $0x30] sm:$0xf]
    %v211 = vld [vmem:[#allocation5 + $0x34] sm:$0xf]
    %v212 = vld [vmem:[#allocation5 + $0x38] sm:$0xf]
    %v213 = vld [vmem:[#allocation5 + $0x3c] sm:$0xf]
    %v215 = vperm.slane %v197, 0
    %v233 = vunpack.c.l.b16 %v181
    %v234 = vunpack.c.l.b16 %v182
    %v235 = vunpack.c.l.b16 %v183
    %v236 = vunpack.c.l.b16 %v184
    %v237 = vunpack.c.l.b16 %v185
    %v238 = vunpack.c.l.b16 %v186
    %v239 = vunpack.c.l.b16 %v187
    %v240 = vunpack.c.l.b16 %v188
    %v241 = vunpack.c.l.b16 %v189
    %v242 = vunpack.c.l.b16 %v190
    %v243 = vunpack.c.l.b16 %v191
    %v244 = vunpack.c.l.b16 %v192
    %v245 = vunpack.c.l.b16 %v193
    %v246 = vunpack.c.l.b16 %v194
    %v247 = vunpack.c.l.b16 %v195
    %v248 = vunpack.c.l.b16 %v196
    %v249 = vpack.c.b16 %v234, %v233
    %v250 = vpack.c.b16 %v236, %v235
    %v251 = vpack.c.b16 %v238, %v237
    %v252 = vpack.c.b16 %v240, %v239
    %v253 = vpack.c.b16 %v242, %v241
    %v254 = vpack.c.b16 %v244, %v243
    %v255 = vpack.c.b16 %v246, %v245
    %v256 = vpack.c.b16 %v248, %v247
    %v281 = vunpack.c.l.b16 %v198
    %v282 = vunpack.c.l.b16 %v199
    %v283 = vunpack.c.l.b16 %v200
    %v284 = vunpack.c.l.b16 %v201
    %v285 = vunpack.c.l.b16 %v202
    %v286 = vunpack.c.l.b16 %v203
    %v287 = vunpack.c.l.b16 %v204
    %v288 = vunpack.c.l.b16 %v205
    %v289 = vunpack.c.l.b16 %v206
    %v290 = vunpack.c.l.b16 %v207
    %v291 = vunpack.c.l.b16 %v208
    %v292 = vunpack.c.l.b16 %v209
    %v293 = vunpack.c.l.b16 %v210
    %v294 = vunpack.c.l.b16 %v211
    %v295 = vunpack.c.l.b16 %v212
    %v296 = vunpack.c.l.b16 %v213
    %v297 = vpack.c.b16 %v282, %v281
    %v298 = vpack.c.b16 %v284, %v283
    %v299 = vpack.c.b16 %v286, %v285
    %v300 = vpack.c.b16 %v288, %v287
    %v301 = vpack.c.b16 %v290, %v289
    %v302 = vpack.c.b16 %v292, %v291
    %v303 = vpack.c.b16 %v294, %v293
    %v304 = vpack.c.b16 %v296, %v295
    %313 = vmatpush.bf16.msra.mxu0 %v304
    %314 = vmatpush.bf16.msra.mxu0 %v303
    %315 = vmatpush.bf16.msra.mxu0 %v302
    %316 = vmatpush.bf16.msra.mxu0 %v301
    %317 = vmatpush.bf16.msra.mxu0 %v300
    %318 = vmatpush.bf16.msra.mxu0 %v299
    %319 = vmatpush.bf16.msra.mxu0 %v298
    %320 = vmatpush.bf16.msra.mxu0 %v297
    %321 = vmatmul.bf16.gmra.mxu0 %v249
    %v322 = vpop.f32.mrf.mxu0
    %v323 = vadd.f32 %v215, %v322
    %v324 = vpop.f32.mrf.mxu0
    %v325 = vadd.f32 %v215, %v324
    %326 = vmatmul.bf16.gmra.mxu0 %v250
    %v327 = vpop.f32.mrf.mxu0
    %v328 = vadd.f32 %v215, %v327
    %v329 = vpop.f32.mrf.mxu0
    %v330 = vadd.f32 %v215, %v329
    %331 = vmatmul.bf16.gmra.mxu0 %v251
    %v332 = vpop.f32.mrf.mxu0
    %v333 = vadd.f32 %v215, %v332
    %v334 = vpop.f32.mrf.mxu0
    %v335 = vadd.f32 %v215, %v334
    %336 = vmatmul.bf16.gmra.mxu0 %v252
    %v337 = vpop.f32.mrf.mxu0
    %v338 = vadd.f32 %v215, %v337
    %v339 = vpop.f32.mrf.mxu0
    %v340 = vadd.f32 %v215, %v339
    %341 = vmatmul.bf16.gmra.mxu0 %v253
    %v342 = vpop.f32.mrf.mxu0
    %v343 = vadd.f32 %v215, %v342
    %v344 = vpop.f32.mrf.mxu0
    %v345 = vadd.f32 %v215, %v344
    %346 = vmatmul.bf16.gmra.mxu0 %v254
    %v347 = vpop.f32.mrf.mxu0
    %v348 = vadd.f32 %v215, %v347
    %v349 = vpop.f32.mrf.mxu0
    %v350 = vadd.f32 %v215, %v349
    %351 = vmatmul.bf16.gmra.mxu0 %v255
    %v352 = vpop.f32.mrf.mxu0
    %v353 = vadd.f32 %v215, %v352
    %v354 = vpop.f32.mrf.mxu0
    %v355 = vadd.f32 %v215, %v354
    %356 = vmatmul.bf16.gmra.mxu0 %v256
    %v357 = vpop.f32.mrf.mxu0
    %v358 = vadd.f32 %v215, %v357
    %v359 = vpop.f32.mrf.mxu0
    %v360 = vadd.f32 %v215, %v359
    %361 = vdwg.mxu0
    %v362 = vmax.f32 %v323, 0.0
    %v363 = vmax.f32 %v325, 0.0
    %v364 = vmax.f32 %v328, 0.0
    %v365 = vmax.f32 %v330, 0.0
    %v366 = vmax.f32 %v333, 0.0
    %v367 = vmax.f32 %v335, 0.0
    %v368 = vmax.f32 %v338, 0.0
    %v369 = vmax.f32 %v340, 0.0
    %v370 = vmax.f32 %v343, 0.0
    %v371 = vmax.f32 %v345, 0.0
    %v372 = vmax.f32 %v348, 0.0
    %v373 = vmax.f32 %v350, 0.0
    %v374 = vmax.f32 %v353, 0.0
    %v375 = vmax.f32 %v355, 0.0
    %v376 = vmax.f32 %v358, 0.0
    %v377 = vmax.f32 %v360, 0.0
    %v378 = vpack.c.bf16 %v363, %v362
    %v379 = vpack.c.bf16 %v365, %v364
    %v380 = vpack.c.bf16 %v367, %v366
    %v381 = vpack.c.bf16 %v369, %v368
    %v382 = vpack.c.bf16 %v371, %v370
    %v383 = vpack.c.bf16 %v373, %v372
    %v384 = vpack.c.bf16 %v375, %v374
    %v385 = vpack.c.bf16 %v377, %v376
    %v386 = vld [vmem:[#allocation10] sm:$0x1]
    %v387 = vld [vmem:[#allocation8] sm:$0xf]
    %v388 = vld [vmem:[#allocation8 + $0x4] sm:$0xf]
    %v389 = vld [vmem:[#allocation8 + $0x8] sm:$0xf]
    %v390 = vld [vmem:[#allocation8 + $0xc] sm:$0xf]
    %v391 = vld [vmem:[#allocation8 + $0x10] sm:$0xf]
    %v392 = vld [vmem:[#allocation8 + $0x14] sm:$0xf]
    %v393 = vld [vmem:[#allocation8 + $0x18] sm:$0xf]
    %v394 = vld [vmem:[#allocation8 + $0x1c] sm:$0xf]
    %v395 = vld [vmem:[#allocation8 + $0x20] sm:$0xf]
    %v396 = vld [vmem:[#allocation8 + $0x24] sm:$0xf]
    %v397 = vld [vmem:[#allocation8 + $0x28] sm:$0xf]
    %v398 = vld [vmem:[#allocation8 + $0x2c] sm:$0xf]
    %v399 = vld [vmem:[#allocation8 + $0x30] sm:$0xf]
    %v400 = vld [vmem:[#allocation8 + $0x34] sm:$0xf]
    %v401 = vld [vmem:[#allocation8 + $0x38] sm:$0xf]
    %v402 = vld [vmem:[#allocation8 + $0x3c] sm:$0xf]
    %v404 = vperm.slane %v386, 0
    %v422 = vunpack.c.l.b16 %v387
    %v423 = vunpack.c.l.b16 %v388
    %v424 = vunpack.c.l.b16 %v389
    %v425 = vunpack.c.l.b16 %v390
    %v426 = vunpack.c.l.b16 %v391
    %v427 = vunpack.c.l.b16 %v392
    %v428 = vunpack.c.l.b16 %v393
    %v429 = vunpack.c.l.b16 %v394
    %v430 = vunpack.c.l.b16 %v395
    %v431 = vunpack.c.l.b16 %v396
    %v432 = vunpack.c.l.b16 %v397
    %v433 = vunpack.c.l.b16 %v398
    %v434 = vunpack.c.l.b16 %v399
    %v435 = vunpack.c.l.b16 %v400
    %v436 = vunpack.c.l.b16 %v401
    %v437 = vunpack.c.l.b16 %v402
    %v438 = vpack.c.b16 %v423, %v422
    %v439 = vpack.c.b16 %v425, %v424
    %v440 = vpack.c.b16 %v427, %v426
    %v441 = vpack.c.b16 %v429, %v428
    %v442 = vpack.c.b16 %v431, %v430
    %v443 = vpack.c.b16 %v433, %v432
    %v444 = vpack.c.b16 %v435, %v434
    %v445 = vpack.c.b16 %v437, %v436
    %454 = vmatpush.bf16.msra.mxu0 %v445
    %455 = vmatpush.bf16.msra.mxu0 %v444
    %456 = vmatpush.bf16.msra.mxu0 %v443
    %457 = vmatpush.bf16.msra.mxu0 %v442
    %458 = vmatpush.bf16.msra.mxu0 %v441
    %459 = vmatpush.bf16.msra.mxu0 %v440
    %460 = vmatpush.bf16.msra.mxu0 %v439
    %461 = vmatpush.bf16.msra.mxu0 %v438
    %462 = vmatmul.bf16.gmra.mxu0 %v378
    %v463 = vpop.f32.mrf.mxu0
    %v464 = vadd.f32 %v404, %v463
    %v465 = vpop.f32.mrf.mxu0
    %v466 = vadd.f32 %v404, %v465
    %467 = vmatmul.bf16.gmra.mxu0 %v379
    %v468 = vpop.f32.mrf.mxu0
    %v469 = vadd.f32 %v404, %v468
    %v470 = vpop.f32.mrf.mxu0
    %v471 = vadd.f32 %v404, %v470
    %472 = vmatmul.bf16.gmra.mxu0 %v380
    %v473 = vpop.f32.mrf.mxu0
    %v474 = vadd.f32 %v404, %v473
    %v475 = vpop.f32.mrf.mxu0
    %v476 = vadd.f32 %v404, %v475
    %477 = vmatmul.bf16.gmra.mxu0 %v381
    %v478 = vpop.f32.mrf.mxu0
    %v479 = vadd.f32 %v404, %v478
    %v480 = vpop.f32.mrf.mxu0
    %v481 = vadd.f32 %v404, %v480
    %482 = vmatmul.bf16.gmra.mxu0 %v382
    %v483 = vpop.f32.mrf.mxu0
    %v484 = vadd.f32 %v404, %v483
    %v485 = vpop.f32.mrf.mxu0
    %v486 = vadd.f32 %v404, %v485
    %487 = vmatmul.bf16.gmra.mxu0 %v383
    %v488 = vpop.f32.mrf.mxu0
    %v489 = vadd.f32 %v404, %v488
    %v490 = vpop.f32.mrf.mxu0
    %v491 = vadd.f32 %v404, %v490
    %492 = vmatmul.bf16.gmra.mxu0 %v384
    %v493 = vpop.f32.mrf.mxu0
    %v494 = vadd.f32 %v404, %v493
    %v495 = vpop.f32.mrf.mxu0
    %v496 = vadd.f32 %v404, %v495
    %497 = vmatmul.bf16.gmra.mxu0 %v385
    %v498 = vpop.f32.mrf.mxu0
    %v499 = vadd.f32 %v404, %v498
    %v500 = vpop.f32.mrf.mxu0
    %v501 = vadd.f32 %v404, %v500
    %502 = vdwg.mxu0
    %v503 = vmax.f32 %v464, 0.0
    %v504 = vmax.f32 %v466, 0.0
    %v505 = vmax.f32 %v469, 0.0
    %v506 = vmax.f32 %v471, 0.0
    %v507 = vmax.f32 %v474, 0.0
    %v508 = vmax.f32 %v476, 0.0
    %v509 = vmax.f32 %v479, 0.0
    %v510 = vmax.f32 %v481, 0.0
    %v511 = vmax.f32 %v484, 0.0
    %v512 = vmax.f32 %v486, 0.0
    %v513 = vmax.f32 %v489, 0.0
    %v514 = vmax.f32 %v491, 0.0
    %v515 = vmax.f32 %v494, 0.0
    %v516 = vmax.f32 %v496, 0.0
    %v517 = vmax.f32 %v499, 0.0
    %v518 = vmax.f32 %v501, 0.0
    %v519 = vpack.c.bf16 %v504, %v503
    %v520 = vpack.c.bf16 %v506, %v505
    %v521 = vpack.c.bf16 %v508, %v507
    %v522 = vpack.c.bf16 %v510, %v509
    %v523 = vpack.c.bf16 %v512, %v511
    %v524 = vpack.c.bf16 %v514, %v513
    %v525 = vpack.c.bf16 %v516, %v515
    %v526 = vpack.c.bf16 %v518, %v517
    %v527 = vld [vmem:[%s6] sm:$0x7]
    %v528 = vld [vmem:[#allocation11] sm:$0xff]
    %v529 = vld [vmem:[#allocation11 + $0x8] sm:$0xf]
    %v530 = vld [vmem:[#allocation11 + $0xc] sm:$0xff]
    %v531 = vld [vmem:[#allocation11 + $0x14] sm:$0xf]
    %v532 = vld [vmem:[#allocation11 + $0x18] sm:$0xff]
    %v533 = vld [vmem:[#allocation11 + $0x20] sm:$0xf]
    %v534 = vld [vmem:[#allocation11 + $0x24] sm:$0xff]
    %v535 = vld [vmem:[#allocation11 + $0x2c] sm:$0xf]
    %v536 = vld [vmem:[#allocation11 + $0x30] sm:$0xff]
    %v537 = vld [vmem:[#allocation11 + $0x38] sm:$0xf]
    %v538 = vld [vmem:[#allocation11 + $0x3c] sm:$0xff]
    %v539 = vld [vmem:[#allocation11 + $0x44] sm:$0xf]
    %v540 = vld [vmem:[#allocation11 + $0x48] sm:$0xff]
    %v541 = vld [vmem:[#allocation11 + $0x50] sm:$0xf]
    %v542 = vld [vmem:[#allocation11 + $0x54] sm:$0xff]
    %v543 = vld [vmem:[#allocation11 + $0x5c] sm:$0xf]
    %v544 = vld [vmem:[#allocation11 + $0x60] sm:$0xff]
    %v545 = vld [vmem:[#allocation11 + $0x68] sm:$0xf]
    %v546 = vld [vmem:[#allocation11 + $0x6c] sm:$0xff]
    %v547 = vld [vmem:[#allocation11 + $0x74] sm:$0xf]
    %v548 = vld [vmem:[#allocation11 + $0x78] sm:$0xff]
    %v549 = vld [vmem:[#allocation11 + $0x80] sm:$0xf]
    %v550 = vld [vmem:[#allocation11 + $0x84] sm:$0xff]
    %v551 = vld [vmem:[#allocation11 + $0x8c] sm:$0xf]
    %v552 = vld [vmem:[#allocation11 + $0x90] sm:$0xff]
    %v553 = vld [vmem:[#allocation11 + $0x98] sm:$0xf]
    %v554 = vld [vmem:[#allocation11 + $0x9c] sm:$0xff]
    %v555 = vld [vmem:[#allocation11 + $0xa4] sm:$0xf]
    %v556 = vld [vmem:[#allocation11 + $0xa8] sm:$0xff]
    %v557 = vld [vmem:[#allocation11 + $0xb0] sm:$0xf]
    %v558 = vld [vmem:[#allocation11 + $0xb4] sm:$0xff]
    %v559 = vld [vmem:[#allocation11 + $0xbc] sm:$0xf]
    %v561 = vperm.slane %v527, 0
    %v562 = vperm.slane %v527, 1
    %v563 = vperm.slane %v527, 2
    %v599 = vunpack.c.l.b16 %v528
    %v600 = vunpack.c.h.b16 %v528
    %v601 = vunpack.c.l.b16 %v529
    %v602 = vunpack.c.l.b16 %v530
    %v603 = vunpack.c.h.b16 %v530
    %v604 = vunpack.c.l.b16 %v531
    %v605 = vunpack.c.l.b16 %v532
    %v606 = vunpack.c.h.b16 %v532
    %v607 = vunpack.c.l.b16 %v533
    %v608 = vunpack.c.l.b16 %v534
    %v609 = vunpack.c.h.b16 %v534
    %v610 = vunpack.c.l.b16 %v535
    %v611 = vunpack.c.l.b16 %v536
    %v612 = vunpack.c.h.b16 %v536
    %v613 = vunpack.c.l.b16 %v537
    %v614 = vunpack.c.l.b16 %v538
    %v615 = vunpack.c.h.b16 %v538
    %v616 = vunpack.c.l.b16 %v539
    %v617 = vunpack.c.l.b16 %v540
    %v618 = vunpack.c.h.b16 %v540
    %v619 = vunpack.c.l.b16 %v541
    %v620 = vunpack.c.l.b16 %v542
    %v621 = vunpack.c.h.b16 %v542
    %v622 = vunpack.c.l.b16 %v543
    %v623 = vunpack.c.l.b16 %v544
    %v624 = vunpack.c.h.b16 %v544
    %v625 = vunpack.c.l.b16 %v545
    %v626 = vunpack.c.l.b16 %v546
    %v627 = vunpack.c.h.b16 %v546
    %v628 = vunpack.c.l.b16 %v547
    %v629 = vunpack.c.l.b16 %v548
    %v630 = vunpack.c.h.b16 %v548
    %v631 = vunpack.c.l.b16 %v549
    %v632 = vunpack.c.l.b16 %v550
    %v633 = vunpack.c.h.b16 %v550
    %v634 = vunpack.c.l.b16 %v551
    %v635 = vunpack.c.l.b16 %v552
    %v636 = vunpack.c.h.b16 %v552
    %v637 = vunpack.c.l.b16 %v553
    %v638 = vunpack.c.l.b16 %v554
    %v639 = vunpack.c.h.b16 %v554
    %v640 = vunpack.c.l.b16 %v555
    %v641 = vunpack.c.l.b16 %v556
    %v642 = vunpack.c.h.b16 %v556
    %v643 = vunpack.c.l.b16 %v557
    %v644 = vunpack.c.l.b16 %v558
    %v645 = vunpack.c.h.b16 %v558
    %v646 = vunpack.c.l.b16 %v559
    %v647 = vpack.c.b16 %v602, %v599
    %v648 = vpack.c.b16 %v603, %v600
    %v649 = vpack.c.b16 %v604, %v601
    %v650 = vpack.c.b16 %v608, %v605
    %v651 = vpack.c.b16 %v609, %v606
    %v652 = vpack.c.b16 %v610, %v607
    %v653 = vpack.c.b16 %v614, %v611
    %v654 = vpack.c.b16 %v615, %v612
    %v655 = vpack.c.b16 %v616, %v613
    %v656 = vpack.c.b16 %v620, %v617
    %v657 = vpack.c.b16 %v621, %v618
    %v658 = vpack.c.b16 %v622, %v619
    %v659 = vpack.c.b16 %v626, %v623
    %v660 = vpack.c.b16 %v627, %v624
    %v661 = vpack.c.b16 %v628, %v625
    %v662 = vpack.c.b16 %v632, %v629
    %v663 = vpack.c.b16 %v633, %v630
    %v664 = vpack.c.b16 %v634, %v631
    %v665 = vpack.c.b16 %v638, %v635
    %v666 = vpack.c.b16 %v639, %v636
    %v667 = vpack.c.b16 %v640, %v637
    %v668 = vpack.c.b16 %v644, %v641
    %v669 = vpack.c.b16 %v645, %v642
    %v670 = vpack.c.b16 %v646, %v643
    %695 = vmatpush.bf16.msra.mxu0 %v668
    %696 = vmatpush.bf16.msra.mxu0 %v665
    %697 = vmatpush.bf16.msra.mxu0 %v662
    %698 = vmatpush.bf16.msra.mxu0 %v659
    %699 = vmatpush.bf16.msra.mxu0 %v656
    %700 = vmatpush.bf16.msra.mxu0 %v653
    %701 = vmatpush.bf16.msra.mxu0 %v650
    %702 = vmatpush.bf16.msra.mxu0 %v647
    %703 = vmatmul.bf16.gmra.mxu0 %v519
    %v704 = vpop.f32.mrf.mxu0
    %v705 = vadd.f32 %v561, %v704
    %v706 = vpop.f32.mrf.mxu0
    %v707 = vadd.f32 %v561, %v706
    %708 = vmatmul.bf16.gmra.mxu0 %v520
    %v709 = vpop.f32.mrf.mxu0
    %v710 = vadd.f32 %v561, %v709
    %v711 = vpop.f32.mrf.mxu0
    %v712 = vadd.f32 %v561, %v711
    %713 = vmatmul.bf16.gmra.mxu0 %v521
    %v714 = vpop.f32.mrf.mxu0
    %v715 = vadd.f32 %v561, %v714
    %v716 = vpop.f32.mrf.mxu0
    %v717 = vadd.f32 %v561, %v716
    %718 = vmatmul.bf16.gmra.mxu0 %v522
    %v719 = vpop.f32.mrf.mxu0
    %v720 = vadd.f32 %v561, %v719
    %v721 = vpop.f32.mrf.mxu0
    %v722 = vadd.f32 %v561, %v721
    %723 = vmatmul.bf16.gmra.mxu0 %v523
    %v724 = vpop.f32.mrf.mxu0
    %v725 = vadd.f32 %v561, %v724
    %v726 = vpop.f32.mrf.mxu0
    %v727 = vadd.f32 %v561, %v726
    %728 = vmatmul.bf16.gmra.mxu0 %v524
    %v729 = vpop.f32.mrf.mxu0
    %v730 = vadd.f32 %v561, %v729
    %v731 = vpop.f32.mrf.mxu0
    %v732 = vadd.f32 %v561, %v731
    %733 = vmatmul.bf16.gmra.mxu0 %v525
    %v734 = vpop.f32.mrf.mxu0
    %v735 = vadd.f32 %v561, %v734
    %v736 = vpop.f32.mrf.mxu0
    %v737 = vadd.f32 %v561, %v736
    %738 = vmatmul.bf16.gmra.mxu0 %v526
    %v739 = vpop.f32.mrf.mxu0
    %v740 = vadd.f32 %v561, %v739
    %v741 = vpop.f32.mrf.mxu0
    %v742 = vadd.f32 %v561, %v741
    %743 = vdwg.mxu0
    %744 = vmatpush.bf16.msra.mxu0 %v669
    %745 = vmatpush.bf16.msra.mxu0 %v666
    %746 = vmatpush.bf16.msra.mxu0 %v663
    %747 = vmatpush.bf16.msra.mxu0 %v660
    %748 = vmatpush.bf16.msra.mxu0 %v657
    %749 = vmatpush.bf16.msra.mxu0 %v654
    %750 = vmatpush.bf16.msra.mxu0 %v651
    %751 = vmatpush.bf16.msra.mxu0 %v648
    %752 = vmatmul.bf16.gmra.mxu0 %v519
    %v753 = vpop.f32.mrf.mxu0
    %v754 = vadd.f32 %v562, %v753
    %v755 = vpop.f32.mrf.mxu0
    %v756 = vadd.f32 %v562, %v755
    %757 = vmatmul.bf16.gmra.mxu0 %v520
    %v758 = vpop.f32.mrf.mxu0
    %v759 = vadd.f32 %v562, %v758
    %v760 = vpop.f32.mrf.mxu0
    %v761 = vadd.f32 %v562, %v760
    %762 = vmatmul.bf16.gmra.mxu0 %v521
    %v763 = vpop.f32.mrf.mxu0
    %v764 = vadd.f32 %v562, %v763
    %v765 = vpop.f32.mrf.mxu0
    %v766 = vadd.f32 %v562, %v765
    %767 = vmatmul.bf16.gmra.mxu0 %v522
    %v768 = vpop.f32.mrf.mxu0
    %v769 = vadd.f32 %v562, %v768
    %v770 = vpop.f32.mrf.mxu0
    %v771 = vadd.f32 %v562, %v770
    %772 = vmatmul.bf16.gmra.mxu0 %v523
    %v773 = vpop.f32.mrf.mxu0
    %v774 = vadd.f32 %v562, %v773
    %v775 = vpop.f32.mrf.mxu0
    %v776 = vadd.f32 %v562, %v775
    %777 = vmatmul.bf16.gmra.mxu0 %v524
    %v778 = vpop.f32.mrf.mxu0
    %v779 = vadd.f32 %v562, %v778
    %v780 = vpop.f32.mrf.mxu0
    %v781 = vadd.f32 %v562, %v780
    %782 = vmatmul.bf16.gmra.mxu0 %v525
    %v783 = vpop.f32.mrf.mxu0
    %v784 = vadd.f32 %v562, %v783
    %v785 = vpop.f32.mrf.mxu0
    %v786 = vadd.f32 %v562, %v785
    %787 = vmatmul.bf16.gmra.mxu0 %v526
    %v788 = vpop.f32.mrf.mxu0
    %v789 = vadd.f32 %v562, %v788
    %v790 = vpop.f32.mrf.mxu0
    %v791 = vadd.f32 %v562, %v790
    %792 = vdwg.mxu0
    %793 = vmatpush.bf16.msra.mxu0 %v670
    %794 = vmatpush.bf16.msra.mxu0 %v667
    %795 = vmatpush.bf16.msra.mxu0 %v664
    %796 = vmatpush.bf16.msra.mxu0 %v661
    %797 = vmatpush.bf16.msra.mxu0 %v658
    %798 = vmatpush.bf16.msra.mxu0 %v655
    %799 = vmatpush.bf16.msra.mxu0 %v652
    %800 = vmatpush.bf16.msra.mxu0 %v649
    %801 = vmatmul.bf16.gmra.mxu0 %v519
    %v802 = vpop.f32.mrf.mxu0
    %v803 = vadd.f32 %v563, %v802
    %v804 = vpop.f32.mrf.mxu0
    %v805 = vadd.f32 %v563, %v804
    %806 = vmatmul.bf16.gmra.mxu0 %v520
    %v807 = vpop.f32.mrf.mxu0
    %v808 = vadd.f32 %v563, %v807
    %v809 = vpop.f32.mrf.mxu0
    %v810 = vadd.f32 %v563, %v809
    %811 = vmatmul.bf16.gmra.mxu0 %v521
    %v812 = vpop.f32.mrf.mxu0
    %v813 = vadd.f32 %v563, %v812
    %v814 = vpop.f32.mrf.mxu0
    %v815 = vadd.f32 %v563, %v814
    %816 = vmatmul.bf16.gmra.mxu0 %v522
    %v817 = vpop.f32.mrf.mxu0
    %v818 = vadd.f32 %v563, %v817
    %v819 = vpop.f32.mrf.mxu0
    %v820 = vadd.f32 %v563, %v819
    %821 = vmatmul.bf16.gmra.mxu0 %v523
    %v822 = vpop.f32.mrf.mxu0
    %v823 = vadd.f32 %v563, %v822
    %v824 = vpop.f32.mrf.mxu0
    %v825 = vadd.f32 %v563, %v824
    %826 = vmatmul.bf16.gmra.mxu0 %v524
    %v827 = vpop.f32.mrf.mxu0
    %v828 = vadd.f32 %v563, %v827
    %v829 = vpop.f32.mrf.mxu0
    %v830 = vadd.f32 %v563, %v829
    %831 = vmatmul.bf16.gmra.mxu0 %v525
    %v832 = vpop.f32.mrf.mxu0
    %v833 = vadd.f32 %v563, %v832
    %v834 = vpop.f32.mrf.mxu0
    %v835 = vadd.f32 %v563, %v834
    %836 = vmatmul.bf16.gmra.mxu0 %v526
    %v837 = vpop.f32.mrf.mxu0
    %v838 = vadd.f32 %v563, %v837
    %v839 = vpop.f32.mrf.mxu0
    %v840 = vadd.f32 %v563, %v839
    %841 = vdwg.mxu0
    %v842 = vmax.f32 %v705, 0.0
    %v843 = vmax.f32 %v754, 0.0
    %v844 = vmax.f32 %v803, 0.0
    %v845 = vmax.f32 %v707, 0.0
    %v846 = vmax.f32 %v756, 0.0
    %v847 = vmax.f32 %v805, 0.0
    %v848 = vmax.f32 %v710, 0.0
    %v849 = vmax.f32 %v759, 0.0
    %v850 = vmax.f32 %v808, 0.0
    %v851 = vmax.f32 %v712, 0.0
    %v852 = vmax.f32 %v761, 0.0
    %v853 = vmax.f32 %v810, 0.0
    %v854 = vmax.f32 %v715, 0.0
    %v855 = vmax.f32 %v764, 0.0
    %v856 = vmax.f32 %v813, 0.0
    %v857 = vmax.f32 %v717, 0.0
    %v858 = vmax.f32 %v766, 0.0
    %v859 = vmax.f32 %v815, 0.0
    %v860 = vmax.f32 %v720, 0.0
    %v861 = vmax.f32 %v769, 0.0
    %v862 = vmax.f32 %v818, 0.0
    %v863 = vmax.f32 %v722, 0.0
    %v864 = vmax.f32 %v771, 0.0
    %v865 = vmax.f32 %v820, 0.0
    %v866 = vmax.f32 %v725, 0.0
    %v867 = vmax.f32 %v774, 0.0
    %v868 = vmax.f32 %v823, 0.0
    %v869 = vmax.f32 %v727, 0.0
    %v870 = vmax.f32 %v776, 0.0
    %v871 = vmax.f32 %v825, 0.0
    %v872 = vmax.f32 %v730, 0.0
    %v873 = vmax.f32 %v779, 0.0
    %v874 = vmax.f32 %v828, 0.0
    %v875 = vmax.f32 %v732, 0.0
    %v876 = vmax.f32 %v781, 0.0
    %v877 = vmax.f32 %v830, 0.0
    %v878 = vmax.f32 %v735, 0.0
    %v879 = vmax.f32 %v784, 0.0
    %v880 = vmax.f32 %v833, 0.0
    %v881 = vmax.f32 %v737, 0.0
    %v882 = vmax.f32 %v786, 0.0
    %v883 = vmax.f32 %v835, 0.0
    %v884 = vmax.f32 %v740, 0.0
    %v885 = vmax.f32 %v789, 0.0
    %v886 = vmax.f32 %v838, 0.0
    %v887 = vmax.f32 %v742, 0.0
    %v888 = vmax.f32 %v791, 0.0
    %v889 = vmax.f32 %v840, 0.0
    %v890 = vpack.c.bf16 %v845, %v842
    %v891 = vpack.c.bf16 %v846, %v843
    %v892 = vpack.c.bf16 %v847, %v844
    %v893 = vpack.c.bf16 %v851, %v848
    %v894 = vpack.c.bf16 %v852, %v849
    %v895 = vpack.c.bf16 %v853, %v850
    %v896 = vpack.c.bf16 %v857, %v854
    %v897 = vpack.c.bf16 %v858, %v855
    %v898 = vpack.c.bf16 %v859, %v856
    %v899 = vpack.c.bf16 %v863, %v860
    %v900 = vpack.c.bf16 %v864, %v861
    %v901 = vpack.c.bf16 %v865, %v862
    %v902 = vpack.c.bf16 %v869, %v866
    %v903 = vpack.c.bf16 %v870, %v867
    %v904 = vpack.c.bf16 %v871, %v868
    %v905 = vpack.c.bf16 %v875, %v872
    %v906 = vpack.c.bf16 %v876, %v873
    %v907 = vpack.c.bf16 %v877, %v874
    %v908 = vpack.c.bf16 %v881, %v878
    %v909 = vpack.c.bf16 %v882, %v879
    %v910 = vpack.c.bf16 %v883, %v880
    %v911 = vpack.c.bf16 %v887, %v884
    %v912 = vpack.c.bf16 %v888, %v885
    %v913 = vpack.c.bf16 %v889, %v886
    %v914 = vld [vmem:[%s8] sm:$0x3]
    %v915 = vld [vmem:[#allocation13] sm:$0xff]
    %v916 = vld [vmem:[#allocation13 + $0x8] sm:$0xff]
    %v917 = vld [vmem:[#allocation13 + $0x10] sm:$0xff]
    %v918 = vld [vmem:[#allocation13 + $0x18] sm:$0xff]
    %v919 = vld [vmem:[#allocation13 + $0x20] sm:$0xff]
    %v920 = vld [vmem:[#allocation13 + $0x28] sm:$0xff]
    %v921 = vld [vmem:[#allocation13 + $0x30] sm:$0xff]
    %v922 = vld [vmem:[#allocation13 + $0x38] sm:$0xff]
    %v923 = vld [vmem:[#allocation13 + $0x40] sm:$0xff]
    %v924 = vld [vmem:[#allocation13 + $0x48] sm:$0xff]
    %v925 = vld [vmem:[#allocation13 + $0x50] sm:$0xff]
    %v926 = vld [vmem:[#allocation13 + $0x58] sm:$0xff]
    %v927 = vld [vmem:[#allocation13 + $0x60] sm:$0xff]
    %v928 = vld [vmem:[#allocation13 + $0x68] sm:$0xff]
    %v929 = vld [vmem:[#allocation13 + $0x70] sm:$0xff]
    %v930 = vld [vmem:[#allocation13 + $0x78] sm:$0xff]
    %v931 = vld [vmem:[#allocation13 + $0x80] sm:$0xff]
    %v932 = vld [vmem:[#allocation13 + $0x88] sm:$0xff]
    %v933 = vld [vmem:[#allocation13 + $0x90] sm:$0xff]
    %v934 = vld [vmem:[#allocation13 + $0x98] sm:$0xff]
    %v935 = vld [vmem:[#allocation13 + $0xa0] sm:$0xff]
    %v936 = vld [vmem:[#allocation13 + $0xa8] sm:$0xff]
    %v937 = vld [vmem:[#allocation13 + $0xb0] sm:$0xff]
    %v938 = vld [vmem:[#allocation13 + $0xb8] sm:$0xff]
    %v939 = vld [vmem:[#allocation13 + $0xc0] sm:$0xff]
    %v940 = vld [vmem:[#allocation13 + $0xc8] sm:$0xff]
    %v941 = vld [vmem:[#allocation13 + $0xd0] sm:$0xff]
    %v942 = vld [vmem:[#allocation13 + $0xd8] sm:$0xff]
    %v943 = vld [vmem:[#allocation13 + $0xe0] sm:$0xff]
    %v944 = vld [vmem:[#allocation13 + $0xe8] sm:$0xff]
    %v945 = vld [vmem:[#allocation13 + $0xf0] sm:$0xff]
    %v946 = vld [vmem:[#allocation13 + $0xf8] sm:$0xff]
    %v947 = vld [vmem:[#allocation13 + $0x100] sm:$0xff]
    %v948 = vld [vmem:[#allocation13 + $0x108] sm:$0xff]
    %v949 = vld [vmem:[#allocation13 + $0x110] sm:$0xff]
    %v950 = vld [vmem:[#allocation13 + $0x118] sm:$0xff]
    %v951 = vld [vmem:[#allocation13 + $0x120] sm:$0xff]
    %v952 = vld [vmem:[#allocation13 + $0x128] sm:$0xff]
    %v953 = vld [vmem:[#allocation13 + $0x130] sm:$0xff]
    %v954 = vld [vmem:[#allocation13 + $0x138] sm:$0xff]
    %v955 = vld [vmem:[#allocation13 + $0x140] sm:$0xff]
    %v956 = vld [vmem:[#allocation13 + $0x148] sm:$0xff]
    %v957 = vld [vmem:[#allocation13 + $0x150] sm:$0xff]
    %v958 = vld [vmem:[#allocation13 + $0x158] sm:$0xff]
    %v959 = vld [vmem:[#allocation13 + $0x160] sm:$0xff]
    %v960 = vld [vmem:[#allocation13 + $0x168] sm:$0xff]
    %v961 = vld [vmem:[#allocation13 + $0x170] sm:$0xff]
    %v962 = vld [vmem:[#allocation13 + $0x178] sm:$0xff]
    %v964 = vperm.slane %v914, 0
    %v965 = vperm.slane %v914, 1
    %v1016 = vunpack.c.l.b16 %v915
    %v1017 = vunpack.c.h.b16 %v915
    %v1018 = vunpack.c.l.b16 %v916
    %v1019 = vunpack.c.h.b16 %v916
    %v1020 = vunpack.c.l.b16 %v917
    %v1021 = vunpack.c.h.b16 %v917
    %v1022 = vunpack.c.l.b16 %v918
    %v1023 = vunpack.c.h.b16 %v918
    %v1024 = vunpack.c.l.b16 %v919
    %v1025 = vunpack.c.h.b16 %v919
    %v1026 = vunpack.c.l.b16 %v920
    %v1027 = vunpack.c.h.b16 %v920
    %v1028 = vunpack.c.l.b16 %v921
    %v1029 = vunpack.c.h.b16 %v921
    %v1030 = vunpack.c.l.b16 %v922
    %v1031 = vunpack.c.h.b16 %v922
    %v1032 = vunpack.c.l.b16 %v923
    %v1033 = vunpack.c.h.b16 %v923
    %v1034 = vunpack.c.l.b16 %v924
    %v1035 = vunpack.c.h.b16 %v924
    %v1036 = vunpack.c.l.b16 %v925
    %v1037 = vunpack.c.h.b16 %v925
    %v1038 = vunpack.c.l.b16 %v926
    %v1039 = vunpack.c.h.b16 %v926
    %v1040 = vunpack.c.l.b16 %v927
    %v1041 = vunpack.c.h.b16 %v927
    %v1042 = vunpack.c.l.b16 %v928
    %v1043 = vunpack.c.h.b16 %v928
    %v1044 = vunpack.c.l.b16 %v929
    %v1045 = vunpack.c.h.b16 %v929
    %v1046 = vunpack.c.l.b16 %v930
    %v1047 = vunpack.c.h.b16 %v930
    %v1048 = vunpack.c.l.b16 %v931
    %v1049 = vunpack.c.h.b16 %v931
    %v1050 = vunpack.c.l.b16 %v932
    %v1051 = vunpack.c.h.b16 %v932
    %v1052 = vunpack.c.l.b16 %v933
    %v1053 = vunpack.c.h.b16 %v933
    %v1054 = vunpack.c.l.b16 %v934
    %v1055 = vunpack.c.h.b16 %v934
    %v1056 = vunpack.c.l.b16 %v935
    %v1057 = vunpack.c.h.b16 %v935
    %v1058 = vunpack.c.l.b16 %v936
    %v1059 = vunpack.c.h.b16 %v936
    %v1060 = vunpack.c.l.b16 %v937
    %v1061 = vunpack.c.h.b16 %v937
    %v1062 = vunpack.c.l.b16 %v938
    %v1063 = vunpack.c.h.b16 %v938
    %v1064 = vunpack.c.l.b16 %v939
    %v1065 = vunpack.c.h.b16 %v939
    %v1066 = vunpack.c.l.b16 %v940
    %v1067 = vunpack.c.h.b16 %v940
    %v1068 = vunpack.c.l.b16 %v941
    %v1069 = vunpack.c.h.b16 %v941
    %v1070 = vunpack.c.l.b16 %v942
    %v1071 = vunpack.c.h.b16 %v942
    %v1072 = vunpack.c.l.b16 %v943
    %v1073 = vunpack.c.h.b16 %v943
    %v1074 = vunpack.c.l.b16 %v944
    %v1075 = vunpack.c.h.b16 %v944
    %v1076 = vunpack.c.l.b16 %v945
    %v1077 = vunpack.c.h.b16 %v945
    %v1078 = vunpack.c.l.b16 %v946
    %v1079 = vunpack.c.h.b16 %v946
    %v1080 = vunpack.c.l.b16 %v947
    %v1081 = vunpack.c.h.b16 %v947
    %v1082 = vunpack.c.l.b16 %v948
    %v1083 = vunpack.c.h.b16 %v948
    %v1084 = vunpack.c.l.b16 %v949
    %v1085 = vunpack.c.h.b16 %v949
    %v1086 = vunpack.c.l.b16 %v950
    %v1087 = vunpack.c.h.b16 %v950
    %v1088 = vunpack.c.l.b16 %v951
    %v1089 = vunpack.c.h.b16 %v951
    %v1090 = vunpack.c.l.b16 %v952
    %v1091 = vunpack.c.h.b16 %v952
    %v1092 = vunpack.c.l.b16 %v953
    %v1093 = vunpack.c.h.b16 %v953
    %v1094 = vunpack.c.l.b16 %v954
    %v1095 = vunpack.c.h.b16 %v954
    %v1096 = vunpack.c.l.b16 %v955
    %v1097 = vunpack.c.h.b16 %v955
    %v1098 = vunpack.c.l.b16 %v956
    %v1099 = vunpack.c.h.b16 %v956
    %v1100 = vunpack.c.l.b16 %v957
    %v1101 = vunpack.c.h.b16 %v957
    %v1102 = vunpack.c.l.b16 %v958
    %v1103 = vunpack.c.h.b16 %v958
    %v1104 = vunpack.c.l.b16 %v959
    %v1105 = vunpack.c.h.b16 %v959
    %v1106 = vunpack.c.l.b16 %v960
    %v1107 = vunpack.c.h.b16 %v960
    %v1108 = vunpack.c.l.b16 %v961
    %v1109 = vunpack.c.h.b16 %v961
    %v1110 = vunpack.c.l.b16 %v962
    %v1111 = vunpack.c.h.b16 %v962
    %v1112 = vpack.c.b16 %v1018, %v1016
    %v1113 = vpack.c.b16 %v1019, %v1017
    %v1114 = vpack.c.b16 %v1022, %v1020
    %v1115 = vpack.c.b16 %v1023, %v1021
    %v1116 = vpack.c.b16 %v1026, %v1024
    %v1117 = vpack.c.b16 %v1027, %v1025
    %v1118 = vpack.c.b16 %v1030, %v1028
    %v1119 = vpack.c.b16 %v1031, %v1029
    %v1120 = vpack.c.b16 %v1034, %v1032
    %v1121 = vpack.c.b16 %v1035, %v1033
    %v1122 = vpack.c.b16 %v1038, %v1036
    %v1123 = vpack.c.b16 %v1039, %v1037
    %v1124 = vpack.c.b16 %v1042, %v1040
    %v1125 = vpack.c.b16 %v1043, %v1041
    %v1126 = vpack.c.b16 %v1046, %v1044
    %v1127 = vpack.c.b16 %v1047, %v1045
    %v1128 = vpack.c.b16 %v1050, %v1048
    %v1129 = vpack.c.b16 %v1051, %v1049
    %v1130 = vpack.c.b16 %v1054, %v1052
    %v1131 = vpack.c.b16 %v1055, %v1053
    %v1132 = vpack.c.b16 %v1058, %v1056
    %v1133 = vpack.c.b16 %v1059, %v1057
    %v1134 = vpack.c.b16 %v1062, %v1060
    %v1135 = vpack.c.b16 %v1063, %v1061
    %v1136 = vpack.c.b16 %v1066, %v1064
    %v1137 = vpack.c.b16 %v1067, %v1065
    %v1138 = vpack.c.b16 %v1070, %v1068
    %v1139 = vpack.c.b16 %v1071, %v1069
    %v1140 = vpack.c.b16 %v1074, %v1072
    %v1141 = vpack.c.b16 %v1075, %v1073
    %v1142 = vpack.c.b16 %v1078, %v1076
    %v1143 = vpack.c.b16 %v1079, %v1077
    %v1144 = vpack.c.b16 %v1082, %v1080
    %v1145 = vpack.c.b16 %v1083, %v1081
    %v1146 = vpack.c.b16 %v1086, %v1084
    %v1147 = vpack.c.b16 %v1087, %v1085
    %v1148 = vpack.c.b16 %v1090, %v1088
    %v1149 = vpack.c.b16 %v1091, %v1089
    %v1150 = vpack.c.b16 %v1094, %v1092
    %v1151 = vpack.c.b16 %v1095, %v1093
    %v1152 = vpack.c.b16 %v1098, %v1096
    %v1153 = vpack.c.b16 %v1099, %v1097
    %v1154 = vpack.c.b16 %v1102, %v1100
    %v1155 = vpack.c.b16 %v1103, %v1101
    %v1156 = vpack.c.b16 %v1106, %v1104
    %v1157 = vpack.c.b16 %v1107, %v1105
    %v1158 = vpack.c.b16 %v1110, %v1108
    %v1159 = vpack.c.b16 %v1111, %v1109
    %1208 = vmatpush.bf16.msra.mxu0 %v1126
    %1209 = vmatpush.bf16.msra.mxu0 %v1124
    %1210 = vmatpush.bf16.msra.mxu0 %v1122
    %1211 = vmatpush.bf16.msra.mxu0 %v1120
    %1212 = vmatpush.bf16.msra.mxu0 %v1118
    %1213 = vmatpush.bf16.msra.mxu0 %v1116
    %1214 = vmatpush.bf16.msra.mxu0 %v1114
    %1215 = vmatpush.bf16.msra.mxu0 %v1112
    %1216 = vmatmul.bf16.gmra.mxu0 %v890
    %v1217 = vpop.f32.mrf.mxu0
    %v1218 = vadd.f32 %v964, %v1217
    %v1219 = vpop.f32.mrf.mxu0
    %v1220 = vadd.f32 %v964, %v1219
    %1221 = vmatmul.bf16.gmra.mxu0 %v893
    %v1222 = vpop.f32.mrf.mxu0
    %v1223 = vadd.f32 %v964, %v1222
    %v1224 = vpop.f32.mrf.mxu0
    %v1225 = vadd.f32 %v964, %v1224
    %1226 = vmatmul.bf16.gmra.mxu0 %v896
    %v1227 = vpop.f32.mrf.mxu0
    %v1228 = vadd.f32 %v964, %v1227
    %v1229 = vpop.f32.mrf.mxu0
    %v1230 = vadd.f32 %v964, %v1229
    %1231 = vmatmul.bf16.gmra.mxu0 %v899
    %v1232 = vpop.f32.mrf.mxu0
    %v1233 = vadd.f32 %v964, %v1232
    %v1234 = vpop.f32.mrf.mxu0
    %v1235 = vadd.f32 %v964, %v1234
    %1236 = vmatmul.bf16.gmra.mxu0 %v902
    %v1237 = vpop.f32.mrf.mxu0
    %v1238 = vadd.f32 %v964, %v1237
    %v1239 = vpop.f32.mrf.mxu0
    %v1240 = vadd.f32 %v964, %v1239
    %1241 = vmatmul.bf16.gmra.mxu0 %v905
    %v1242 = vpop.f32.mrf.mxu0
    %v1243 = vadd.f32 %v964, %v1242
    %v1244 = vpop.f32.mrf.mxu0
    %v1245 = vadd.f32 %v964, %v1244
    %1246 = vmatmul.bf16.gmra.mxu0 %v908
    %v1247 = vpop.f32.mrf.mxu0
    %v1248 = vadd.f32 %v964, %v1247
    %v1249 = vpop.f32.mrf.mxu0
    %v1250 = vadd.f32 %v964, %v1249
    %1251 = vmatmul.bf16.gmra.mxu0 %v911
    %v1252 = vpop.f32.mrf.mxu0
    %v1253 = vadd.f32 %v964, %v1252
    %v1254 = vpop.f32.mrf.mxu0
    %v1255 = vadd.f32 %v964, %v1254
    %1256 = vdwg.mxu0
    %1257 = vmatpush.bf16.msra.mxu0 %v1142
    %1258 = vmatpush.bf16.msra.mxu0 %v1140
    %1259 = vmatpush.bf16.msra.mxu0 %v1138
    %1260 = vmatpush.bf16.msra.mxu0 %v1136
    %1261 = vmatpush.bf16.msra.mxu0 %v1134
    %1262 = vmatpush.bf16.msra.mxu0 %v1132
    %1263 = vmatpush.bf16.msra.mxu0 %v1130
    %1264 = vmatpush.bf16.msra.mxu0 %v1128
    %1265 = vmatmul.bf16.gmra.mxu0 %v891
    %v1266 = vpop.f32.mrf.mxu0
    %v1267 = vadd.f32 %v1218, %v1266
    %v1268 = vpop.f32.mrf.mxu0
    %v1269 = vadd.f32 %v1220, %v1268
    %1270 = vmatmul.bf16.gmra.mxu0 %v894
    %v1271 = vpop.f32.mrf.mxu0
    %v1272 = vadd.f32 %v1223, %v1271
    %v1273 = vpop.f32.mrf.mxu0
    %v1274 = vadd.f32 %v1225, %v1273
    %1275 = vmatmul.bf16.gmra.mxu0 %v897
    %v1276 = vpop.f32.mrf.mxu0
    %v1277 = vadd.f32 %v1228, %v1276
    %v1278 = vpop.f32.mrf.mxu0
    %v1279 = vadd.f32 %v1230, %v1278
    %1280 = vmatmul.bf16.gmra.mxu0 %v900
    %v1281 = vpop.f32.mrf.mxu0
    %v1282 = vadd.f32 %v1233, %v1281
    %v1283 = vpop.f32.mrf.mxu0
    %v1284 = vadd.f32 %v1235, %v1283
    %1285 = vmatmul.bf16.gmra.mxu0 %v903
    %v1286 = vpop.f32.mrf.mxu0
    %v1287 = vadd.f32 %v1238, %v1286
    %v1288 = vpop.f32.mrf.mxu0
    %v1289 = vadd.f32 %v1240, %v1288
    %1290 = vmatmul.bf16.gmra.mxu0 %v906
    %v1291 = vpop.f32.mrf.mxu0
    %v1292 = vadd.f32 %v1243, %v1291
    %v1293 = vpop.f32.mrf.mxu0
    %v1294 = vadd.f32 %v1245, %v1293
    %1295 = vmatmul.bf16.gmra.mxu0 %v909
    %v1296 = vpop.f32.mrf.mxu0
    %v1297 = vadd.f32 %v1248, %v1296
    %v1298 = vpop.f32.mrf.mxu0
    %v1299 = vadd.f32 %v1250, %v1298
    %1300 = vmatmul.bf16.gmra.mxu0 %v912
    %v1301 = vpop.f32.mrf.mxu0
    %v1302 = vadd.f32 %v1253, %v1301
    %v1303 = vpop.f32.mrf.mxu0
    %v1304 = vadd.f32 %v1255, %v1303
    %1305 = vdwg.mxu0
    %1306 = vmatpush.bf16.msra.mxu0 %v1158
    %1307 = vmatpush.bf16.msra.mxu0 %v1156
    %1308 = vmatpush.bf16.msra.mxu0 %v1154
    %1309 = vmatpush.bf16.msra.mxu0 %v1152
    %1310 = vmatpush.bf16.msra.mxu0 %v1150
    %1311 = vmatpush.bf16.msra.mxu0 %v1148
    %1312 = vmatpush.bf16.msra.mxu0 %v1146
    %1313 = vmatpush.bf16.msra.mxu0 %v1144
    %1314 = vmatmul.bf16.gmra.mxu0 %v892
    %v1315 = vpop.f32.mrf.mxu0
    %v1316 = vadd.f32 %v1267, %v1315
    %v1317 = vpop.f32.mrf.mxu0
    %v1318 = vadd.f32 %v1269, %v1317
    %1319 = vmatmul.bf16.gmra.mxu0 %v895
    %v1320 = vpop.f32.mrf.mxu0
    %v1321 = vadd.f32 %v1272, %v1320
    %v1322 = vpop.f32.mrf.mxu0
    %v1323 = vadd.f32 %v1274, %v1322
    %1324 = vmatmul.bf16.gmra.mxu0 %v898
    %v1325 = vpop.f32.mrf.mxu0
    %v1326 = vadd.f32 %v1277, %v1325
    %v1327 = vpop.f32.mrf.mxu0
    %v1328 = vadd.f32 %v1279, %v1327
    %1329 = vmatmul.bf16.gmra.mxu0 %v901
    %v1330 = vpop.f32.mrf.mxu0
    %v1331 = vadd.f32 %v1282, %v1330
    %v1332 = vpop.f32.mrf.mxu0
    %v1333 = vadd.f32 %v1284, %v1332
    %1334 = vmatmul.bf16.gmra.mxu0 %v904
    %v1335 = vpop.f32.mrf.mxu0
    %v1336 = vadd.f32 %v1287, %v1335
    %v1337 = vpop.f32.mrf.mxu0
    %v1338 = vadd.f32 %v1289, %v1337
    %1339 = vmatmul.bf16.gmra.mxu0 %v907
    %v1340 = vpop.f32.mrf.mxu0
    %v1341 = vadd.f32 %v1292, %v1340
    %v1342 = vpop.f32.mrf.mxu0
    %v1343 = vadd.f32 %v1294, %v1342
    %1344 = vmatmul.bf16.gmra.mxu0 %v910
    %v1345 = vpop.f32.mrf.mxu0
    %v1346 = vadd.f32 %v1297, %v1345
    %v1347 = vpop.f32.mrf.mxu0
    %v1348 = vadd.f32 %v1299, %v1347
    %1349 = vmatmul.bf16.gmra.mxu0 %v913
    %v1350 = vpop.f32.mrf.mxu0
    %v1351 = vadd.f32 %v1302, %v1350
    %v1352 = vpop.f32.mrf.mxu0
    %v1353 = vadd.f32 %v1304, %v1352
    %1354 = vdwg.mxu0
    %1355 = vmatpush.bf16.msra.mxu0 %v1127
    %1356 = vmatpush.bf16.msra.mxu0 %v1125
    %1357 = vmatpush.bf16.msra.mxu0 %v1123
    %1358 = vmatpush.bf16.msra.mxu0 %v1121
    %1359 = vmatpush.bf16.msra.mxu0 %v1119
    %1360 = vmatpush.bf16.msra.mxu0 %v1117
    %1361 = vmatpush.bf16.msra.mxu0 %v1115
    %1362 = vmatpush.bf16.msra.mxu0 %v1113
    %1363 = vmatmul.bf16.gmra.mxu0 %v890
    %v1364 = vpop.f32.mrf.mxu0
    %v1365 = vadd.f32 %v965, %v1364
    %v1366 = vpop.f32.mrf.mxu0
    %v1367 = vadd.f32 %v965, %v1366
    %1368 = vmatmul.bf16.gmra.mxu0 %v893
    %v1369 = vpop.f32.mrf.mxu0
    %v1370 = vadd.f32 %v965, %v1369
    %v1371 = vpop.f32.mrf.mxu0
    %v1372 = vadd.f32 %v965, %v1371
    %1373 = vmatmul.bf16.gmra.mxu0 %v896
    %v1374 = vpop.f32.mrf.mxu0
    %v1375 = vadd.f32 %v965, %v1374
    %v1376 = vpop.f32.mrf.mxu0
    %v1377 = vadd.f32 %v965, %v1376
    %1378 = vmatmul.bf16.gmra.mxu0 %v899
    %v1379 = vpop.f32.mrf.mxu0
    %v1380 = vadd.f32 %v965, %v1379
    %v1381 = vpop.f32.mrf.mxu0
    %v1382 = vadd.f32 %v965, %v1381
    %1383 = vmatmul.bf16.gmra.mxu0 %v902
    %v1384 = vpop.f32.mrf.mxu0
    %v1385 = vadd.f32 %v965, %v1384
    %v1386 = vpop.f32.mrf.mxu0
    %v1387 = vadd.f32 %v965, %v1386
    %1388 = vmatmul.bf16.gmra.mxu0 %v905
    %v1389 = vpop.f32.mrf.mxu0
    %v1390 = vadd.f32 %v965, %v1389
    %v1391 = vpop.f32.mrf.mxu0
    %v1392 = vadd.f32 %v965, %v1391
    %1393 = vmatmul.bf16.gmra.mxu0 %v908
    %v1394 = vpop.f32.mrf.mxu0
    %v1395 = vadd.f32 %v965, %v1394
    %v1396 = vpop.f32.mrf.mxu0
    %v1397 = vadd.f32 %v965, %v1396
    %1398 = vmatmul.bf16.gmra.mxu0 %v911
    %v1399 = vpop.f32.mrf.mxu0
    %v1400 = vadd.f32 %v965, %v1399
    %v1401 = vpop.f32.mrf.mxu0
    %v1402 = vadd.f32 %v965, %v1401
    %1403 = vdwg.mxu0
    %1404 = vmatpush.bf16.msra.mxu0 %v1143
    %1405 = vmatpush.bf16.msra.mxu0 %v1141
    %1406 = vmatpush.bf16.msra.mxu0 %v1139
    %1407 = vmatpush.bf16.msra.mxu0 %v1137
    %1408 = vmatpush.bf16.msra.mxu0 %v1135
    %1409 = vmatpush.bf16.msra.mxu0 %v1133
    %1410 = vmatpush.bf16.msra.mxu0 %v1131
    %1411 = vmatpush.bf16.msra.mxu0 %v1129
    %1412 = vmatmul.bf16.gmra.mxu0 %v891
    %v1413 = vpop.f32.mrf.mxu0
    %v1414 = vadd.f32 %v1365, %v1413
    %v1415 = vpop.f32.mrf.mxu0
    %v1416 = vadd.f32 %v1367, %v1415
    %1417 = vmatmul.bf16.gmra.mxu0 %v894
    %v1418 = vpop.f32.mrf.mxu0
    %v1419 = vadd.f32 %v1370, %v1418
    %v1420 = vpop.f32.mrf.mxu0
    %v1421 = vadd.f32 %v1372, %v1420
    %1422 = vmatmul.bf16.gmra.mxu0 %v897
    %v1423 = vpop.f32.mrf.mxu0
    %v1424 = vadd.f32 %v1375, %v1423
    %v1425 = vpop.f32.mrf.mxu0
    %v1426 = vadd.f32 %v1377, %v1425
    %1427 = vmatmul.bf16.gmra.mxu0 %v900
    %v1428 = vpop.f32.mrf.mxu0
    %v1429 = vadd.f32 %v1380, %v1428
    %v1430 = vpop.f32.mrf.mxu0
    %v1431 = vadd.f32 %v1382, %v1430
    %1432 = vmatmul.bf16.gmra.mxu0 %v903
    %v1433 = vpop.f32.mrf.mxu0
    %v1434 = vadd.f32 %v1385, %v1433
    %v1435 = vpop.f32.mrf.mxu0
    %v1436 = vadd.f32 %v1387, %v1435
    %1437 = vmatmul.bf16.gmra.mxu0 %v906
    %v1438 = vpop.f32.mrf.mxu0
    %v1439 = vadd.f32 %v1390, %v1438
    %v1440 = vpop.f32.mrf.mxu0
    %v1441 = vadd.f32 %v1392, %v1440
    %1442 = vmatmul.bf16.gmra.mxu0 %v909
    %v1443 = vpop.f32.mrf.mxu0
    %v1444 = vadd.f32 %v1395, %v1443
    %v1445 = vpop.f32.mrf.mxu0
    %v1446 = vadd.f32 %v1397, %v1445
    %1447 = vmatmul.bf16.gmra.mxu0 %v912
    %v1448 = vpop.f32.mrf.mxu0
    %v1449 = vadd.f32 %v1400, %v1448
    %v1450 = vpop.f32.mrf.mxu0
    %v1451 = vadd.f32 %v1402, %v1450
    %1452 = vdwg.mxu0
    %1453 = vmatpush.bf16.msra.mxu0 %v1159
    %1454 = vmatpush.bf16.msra.mxu0 %v1157
    %1455 = vmatpush.bf16.msra.mxu0 %v1155
    %1456 = vmatpush.bf16.msra.mxu0 %v1153
    %1457 = vmatpush.bf16.msra.mxu0 %v1151
    %1458 = vmatpush.bf16.msra.mxu0 %v1149
    %1459 = vmatpush.bf16.msra.mxu0 %v1147
    %1460 = vmatpush.bf16.msra.mxu0 %v1145
    %1461 = vmatmul.bf16.gmra.mxu0 %v892
    %v1462 = vpop.f32.mrf.mxu0
    %v1463 = vadd.f32 %v1414, %v1462
    %v1464 = vpop.f32.mrf.mxu0
    %v1465 = vadd.f32 %v1416, %v1464
    %1466 = vmatmul.bf16.gmra.mxu0 %v895
    %v1467 = vpop.f32.mrf.mxu0
    %v1468 = vadd.f32 %v1419, %v1467
    %v1469 = vpop.f32.mrf.mxu0
    %v1470 = vadd.f32 %v1421, %v1469
    %1471 = vmatmul.bf16.gmra.mxu0 %v898
    %v1472 = vpop.f32.mrf.mxu0
    %v1473 = vadd.f32 %v1424, %v1472
    %v1474 = vpop.f32.mrf.mxu0
    %v1475 = vadd.f32 %v1426, %v1474
    %1476 = vmatmul.bf16.gmra.mxu0 %v901
    %v1477 = vpop.f32.mrf.mxu0
    %v1478 = vadd.f32 %v1429, %v1477
    %v1479 = vpop.f32.mrf.mxu0
    %v1480 = vadd.f32 %v1431, %v1479
    %1481 = vmatmul.bf16.gmra.mxu0 %v904
    %v1482 = vpop.f32.mrf.mxu0
    %v1483 = vadd.f32 %v1434, %v1482
    %v1484 = vpop.f32.mrf.mxu0
    %v1485 = vadd.f32 %v1436, %v1484
    %1486 = vmatmul.bf16.gmra.mxu0 %v907
    %v1487 = vpop.f32.mrf.mxu0
    %v1488 = vadd.f32 %v1439, %v1487
    %v1489 = vpop.f32.mrf.mxu0
    %v1490 = vadd.f32 %v1441, %v1489
    %1491 = vmatmul.bf16.gmra.mxu0 %v910
    %v1492 = vpop.f32.mrf.mxu0
    %v1493 = vadd.f32 %v1444, %v1492
    %v1494 = vpop.f32.mrf.mxu0
    %v1495 = vadd.f32 %v1446, %v1494
    %1496 = vmatmul.bf16.gmra.mxu0 %v913
    %v1497 = vpop.f32.mrf.mxu0
    %v1498 = vadd.f32 %v1449, %v1497
    %v1499 = vpop.f32.mrf.mxu0
    %v1500 = vadd.f32 %v1451, %v1499
    %1501 = vdwg.mxu0
    %v1502 = vmax.f32 %v1316, 0.0
    %v1503 = vmax.f32 %v1463, 0.0
    %v1504 = vmax.f32 %v1318, 0.0
    %v1505 = vmax.f32 %v1465, 0.0
    %v1506 = vmax.f32 %v1321, 0.0
    %v1507 = vmax.f32 %v1468, 0.0
    %v1508 = vmax.f32 %v1323, 0.0
    %v1509 = vmax.f32 %v1470, 0.0
    %v1510 = vmax.f32 %v1326, 0.0
    %v1511 = vmax.f32 %v1473, 0.0
    %v1512 = vmax.f32 %v1328, 0.0
    %v1513 = vmax.f32 %v1475, 0.0
    %v1514 = vmax.f32 %v1331, 0.0
    %v1515 = vmax.f32 %v1478, 0.0
    %v1516 = vmax.f32 %v1333, 0.0
    %v1517 = vmax.f32 %v1480, 0.0
    %v1518 = vmax.f32 %v1336, 0.0
    %v1519 = vmax.f32 %v1483, 0.0
    %v1520 = vmax.f32 %v1338, 0.0
    %v1521 = vmax.f32 %v1485, 0.0
    %v1522 = vmax.f32 %v1341, 0.0
    %v1523 = vmax.f32 %v1488, 0.0
    %v1524 = vmax.f32 %v1343, 0.0
    %v1525 = vmax.f32 %v1490, 0.0
    %v1526 = vmax.f32 %v1346, 0.0
    %v1527 = vmax.f32 %v1493, 0.0
    %v1528 = vmax.f32 %v1348, 0.0
    %v1529 = vmax.f32 %v1495, 0.0
    %v1530 = vmax.f32 %v1351, 0.0
    %v1531 = vmax.f32 %v1498, 0.0
    %v1532 = vmax.f32 %v1353, 0.0
    %v1533 = vmax.f32 %v1500, 0.0
    %v1534 = vpack.c.bf16 %v1504, %v1502
    %v1535 = vpack.c.bf16 %v1505, %v1503
    %v1536 = vpack.c.bf16 %v1508, %v1506
    %v1537 = vpack.c.bf16 %v1509, %v1507
    %v1538 = vpack.c.bf16 %v1512, %v1510
    %v1539 = vpack.c.bf16 %v1513, %v1511
    %v1540 = vpack.c.bf16 %v1516, %v1514
    %v1541 = vpack.c.bf16 %v1517, %v1515
    %v1542 = vpack.c.bf16 %v1520, %v1518
    %v1543 = vpack.c.bf16 %v1521, %v1519
    %v1544 = vpack.c.bf16 %v1524, %v1522
    %v1545 = vpack.c.bf16 %v1525, %v1523
    %v1546 = vpack.c.bf16 %v1528, %v1526
    %v1547 = vpack.c.bf16 %v1529, %v1527
    %v1548 = vpack.c.bf16 %v1532, %v1530
    %v1549 = vpack.c.bf16 %v1533, %v1531
    %v1550 = vld [vmem:[%s10] sm:$0x1]
    %v1551 = vld [vmem:[#allocation14] sm:$0xf]
    %v1552 = vld [vmem:[#allocation14 + $0x4] sm:$0xf]
    %v1553 = vld [vmem:[#allocation14 + $0x8] sm:$0xf]
    %v1554 = vld [vmem:[#allocation14 + $0xc] sm:$0xf]
    %v1555 = vld [vmem:[#allocation14 + $0x10] sm:$0xf]
    %v1556 = vld [vmem:[#allocation14 + $0x14] sm:$0xf]
    %v1557 = vld [vmem:[#allocation14 + $0x18] sm:$0xf]
    %v1558 = vld [vmem:[#allocation14 + $0x1c] sm:$0xf]
    %v1559 = vld [vmem:[#allocation14 + $0x20] sm:$0xf]
    %v1560 = vld [vmem:[#allocation14 + $0x24] sm:$0xf]
    %v1561 = vld [vmem:[#allocation14 + $0x28] sm:$0xf]
    %v1562 = vld [vmem:[#allocation14 + $0x2c] sm:$0xf]
    %v1563 = vld [vmem:[#allocation14 + $0x30] sm:$0xf]
    %v1564 = vld [vmem:[#allocation14 + $0x34] sm:$0xf]
    %v1565 = vld [vmem:[#allocation14 + $0x38] sm:$0xf]
    %v1566 = vld [vmem:[#allocation14 + $0x3c] sm:$0xf]
    %v1567 = vld [vmem:[#allocation14 + $0x40] sm:$0xf]
    %v1568 = vld [vmem:[#allocation14 + $0x44] sm:$0xf]
    %v1569 = vld [vmem:[#allocation14 + $0x48] sm:$0xf]
    %v1570 = vld [vmem:[#allocation14 + $0x4c] sm:$0xf]
    %v1571 = vld [vmem:[#allocation14 + $0x50] sm:$0xf]
    %v1572 = vld [vmem:[#allocation14 + $0x54] sm:$0xf]
    %v1573 = vld [vmem:[#allocation14 + $0x58] sm:$0xf]
    %v1574 = vld [vmem:[#allocation14 + $0x5c] sm:$0xf]
    %v1575 = vld [vmem:[#allocation14 + $0x60] sm:$0xf]
    %v1576 = vld [vmem:[#allocation14 + $0x64] sm:$0xf]
    %v1577 = vld [vmem:[#allocation14 + $0x68] sm:$0xf]
    %v1578 = vld [vmem:[#allocation14 + $0x6c] sm:$0xf]
    %v1579 = vld [vmem:[#allocation14 + $0x70] sm:$0xf]
    %v1580 = vld [vmem:[#allocation14 + $0x74] sm:$0xf]
    %v1581 = vld [vmem:[#allocation14 + $0x78] sm:$0xf]
    %v1582 = vld [vmem:[#allocation14 + $0x7c] sm:$0xf]
    %v1584 = vperm.slane %v1550, 0
    %v1618 = vunpack.c.l.b16 %v1551
    %v1619 = vunpack.c.l.b16 %v1552
    %v1620 = vunpack.c.l.b16 %v1553
    %v1621 = vunpack.c.l.b16 %v1554
    %v1622 = vunpack.c.l.b16 %v1555
    %v1623 = vunpack.c.l.b16 %v1556
    %v1624 = vunpack.c.l.b16 %v1557
    %v1625 = vunpack.c.l.b16 %v1558
    %v1626 = vunpack.c.l.b16 %v1559
    %v1627 = vunpack.c.l.b16 %v1560
    %v1628 = vunpack.c.l.b16 %v1561
    %v1629 = vunpack.c.l.b16 %v1562
    %v1630 = vunpack.c.l.b16 %v1563
    %v1631 = vunpack.c.l.b16 %v1564
    %v1632 = vunpack.c.l.b16 %v1565
    %v1633 = vunpack.c.l.b16 %v1566
    %v1634 = vunpack.c.l.b16 %v1567
    %v1635 = vunpack.c.l.b16 %v1568
    %v1636 = vunpack.c.l.b16 %v1569
    %v1637 = vunpack.c.l.b16 %v1570
    %v1638 = vunpack.c.l.b16 %v1571
    %v1639 = vunpack.c.l.b16 %v1572
    %v1640 = vunpack.c.l.b16 %v1573
    %v1641 = vunpack.c.l.b16 %v1574
    %v1642 = vunpack.c.l.b16 %v1575
    %v1643 = vunpack.c.l.b16 %v1576
    %v1644 = vunpack.c.l.b16 %v1577
    %v1645 = vunpack.c.l.b16 %v1578
    %v1646 = vunpack.c.l.b16 %v1579
    %v1647 = vunpack.c.l.b16 %v1580
    %v1648 = vunpack.c.l.b16 %v1581
    %v1649 = vunpack.c.l.b16 %v1582
    %v1650 = vpack.c.b16 %v1619, %v1618
    %v1651 = vpack.c.b16 %v1621, %v1620
    %v1652 = vpack.c.b16 %v1623, %v1622
    %v1653 = vpack.c.b16 %v1625, %v1624
    %v1654 = vpack.c.b16 %v1627, %v1626
    %v1655 = vpack.c.b16 %v1629, %v1628
    %v1656 = vpack.c.b16 %v1631, %v1630
    %v1657 = vpack.c.b16 %v1633, %v1632
    %v1658 = vpack.c.b16 %v1635, %v1634
    %v1659 = vpack.c.b16 %v1637, %v1636
    %v1660 = vpack.c.b16 %v1639, %v1638
    %v1661 = vpack.c.b16 %v1641, %v1640
    %v1662 = vpack.c.b16 %v1643, %v1642
    %v1663 = vpack.c.b16 %v1645, %v1644
    %v1664 = vpack.c.b16 %v1647, %v1646
    %v1665 = vpack.c.b16 %v1649, %v1648
    %1682 = vmatpush.bf16.msra.mxu0 %v1657
    %1683 = vmatpush.bf16.msra.mxu0 %v1656
    %1684 = vmatpush.bf16.msra.mxu0 %v1655
    %1685 = vmatpush.bf16.msra.mxu0 %v1654
    %1686 = vmatpush.bf16.msra.mxu0 %v1653
    %1687 = vmatpush.bf16.msra.mxu0 %v1652
    %1688 = vmatpush.bf16.msra.mxu0 %v1651
    %1689 = vmatpush.bf16.msra.mxu0 %v1650
    %1690 = vmatmul.bf16.gmra.mxu0 %v1534
    %v1691 = vpop.f32.mrf.mxu0
    %v1692 = vadd.f32 %v1584, %v1691
    %v1693 = vpop.f32.mrf.mxu0
    %v1694 = vadd.f32 %v1584, %v1693
    %1695 = vmatmul.bf16.gmra.mxu0 %v1536
    %v1696 = vpop.f32.mrf.mxu0
    %v1697 = vadd.f32 %v1584, %v1696
    %v1698 = vpop.f32.mrf.mxu0
    %v1699 = vadd.f32 %v1584, %v1698
    %1700 = vmatmul.bf16.gmra.mxu0 %v1538
    %v1701 = vpop.f32.mrf.mxu0
    %v1702 = vadd.f32 %v1584, %v1701
    %v1703 = vpop.f32.mrf.mxu0
    %v1704 = vadd.f32 %v1584, %v1703
    %1705 = vmatmul.bf16.gmra.mxu0 %v1540
    %v1706 = vpop.f32.mrf.mxu0
    %v1707 = vadd.f32 %v1584, %v1706
    %v1708 = vpop.f32.mrf.mxu0
    %v1709 = vadd.f32 %v1584, %v1708
    %1710 = vmatmul.bf16.gmra.mxu0 %v1542
    %v1711 = vpop.f32.mrf.mxu0
    %v1712 = vadd.f32 %v1584, %v1711
    %v1713 = vpop.f32.mrf.mxu0
    %v1714 = vadd.f32 %v1584, %v1713
    %1715 = vmatmul.bf16.gmra.mxu0 %v1544
    %v1716 = vpop.f32.mrf.mxu0
    %v1717 = vadd.f32 %v1584, %v1716
    %v1718 = vpop.f32.mrf.mxu0
    %v1719 = vadd.f32 %v1584, %v1718
    %1720 = vmatmul.bf16.gmra.mxu0 %v1546
    %v1721 = vpop.f32.mrf.mxu0
    %v1722 = vadd.f32 %v1584, %v1721
    %v1723 = vpop.f32.mrf.mxu0
    %v1724 = vadd.f32 %v1584, %v1723
    %1725 = vmatmul.bf16.gmra.mxu0 %v1548
    %v1726 = vpop.f32.mrf.mxu0
    %v1727 = vadd.f32 %v1584, %v1726
    %v1728 = vpop.f32.mrf.mxu0
    %v1729 = vadd.f32 %v1584, %v1728
    %1730 = vdwg.mxu0
    %1731 = vmatpush.bf16.msra.mxu0 %v1665
    %1732 = vmatpush.bf16.msra.mxu0 %v1664
    %1733 = vmatpush.bf16.msra.mxu0 %v1663
    %1734 = vmatpush.bf16.msra.mxu0 %v1662
    %1735 = vmatpush.bf16.msra.mxu0 %v1661
    %1736 = vmatpush.bf16.msra.mxu0 %v1660
    %1737 = vmatpush.bf16.msra.mxu0 %v1659
    %1738 = vmatpush.bf16.msra.mxu0 %v1658
    %1739 = vmatmul.bf16.gmra.mxu0 %v1535
    %v1740 = vpop.f32.mrf.mxu0
    %v1741 = vadd.f32 %v1692, %v1740
    %v1742 = vpop.f32.mrf.mxu0
    %v1743 = vadd.f32 %v1694, %v1742
    %1744 = vmatmul.bf16.gmra.mxu0 %v1537
    %v1745 = vpop.f32.mrf.mxu0
    %v1746 = vadd.f32 %v1697, %v1745
    %v1747 = vpop.f32.mrf.mxu0
    %v1748 = vadd.f32 %v1699, %v1747
    %1749 = vmatmul.bf16.gmra.mxu0 %v1539
    %v1750 = vpop.f32.mrf.mxu0
    %v1751 = vadd.f32 %v1702, %v1750
    %v1752 = vpop.f32.mrf.mxu0
    %v1753 = vadd.f32 %v1704, %v1752
    %1754 = vmatmul.bf16.gmra.mxu0 %v1541
    %v1755 = vpop.f32.mrf.mxu0
    %v1756 = vadd.f32 %v1707, %v1755
    %v1757 = vpop.f32.mrf.mxu0
    %v1758 = vadd.f32 %v1709, %v1757
    %1759 = vmatmul.bf16.gmra.mxu0 %v1543
    %v1760 = vpop.f32.mrf.mxu0
    %v1761 = vadd.f32 %v1712, %v1760
    %v1762 = vpop.f32.mrf.mxu0
    %v1763 = vadd.f32 %v1714, %v1762
    %1764 = vmatmul.bf16.gmra.mxu0 %v1545
    %v1765 = vpop.f32.mrf.mxu0
    %v1766 = vadd.f32 %v1717, %v1765
    %v1767 = vpop.f32.mrf.mxu0
    %v1768 = vadd.f32 %v1719, %v1767
    %1769 = vmatmul.bf16.gmra.mxu0 %v1547
    %v1770 = vpop.f32.mrf.mxu0
    %v1771 = vadd.f32 %v1722, %v1770
    %v1772 = vpop.f32.mrf.mxu0
    %v1773 = vadd.f32 %v1724, %v1772
    %1774 = vmatmul.bf16.gmra.mxu0 %v1549
    %v1775 = vpop.f32.mrf.mxu0
    %v1776 = vadd.f32 %v1727, %v1775
    %v1777 = vpop.f32.mrf.mxu0
    %v1778 = vadd.f32 %v1729, %v1777
    %1779 = vdwg.mxu0
    %v1780 = vmax.f32 %v1741, 0.0
    %v1781 = vmax.f32 %v1743, 0.0
    %v1782 = vmax.f32 %v1746, 0.0
    %v1783 = vmax.f32 %v1748, 0.0
    %v1784 = vmax.f32 %v1751, 0.0
    %v1785 = vmax.f32 %v1753, 0.0
    %v1786 = vmax.f32 %v1756, 0.0
    %v1787 = vmax.f32 %v1758, 0.0
    %v1788 = vmax.f32 %v1761, 0.0
    %v1789 = vmax.f32 %v1763, 0.0
    %v1790 = vmax.f32 %v1766, 0.0
    %v1791 = vmax.f32 %v1768, 0.0
    %v1792 = vmax.f32 %v1771, 0.0
    %v1793 = vmax.f32 %v1773, 0.0
    %v1794 = vmax.f32 %v1776, 0.0
    %v1795 = vmax.f32 %v1778, 0.0
    %v1796 = vpack.c.bf16 %v1781, %v1780
    %v1797 = vpack.c.bf16 %v1783, %v1782
    %v1798 = vpack.c.bf16 %v1785, %v1784
    %v1799 = vpack.c.bf16 %v1787, %v1786
    %v1800 = vpack.c.bf16 %v1789, %v1788
    %v1801 = vpack.c.bf16 %v1791, %v1790
    %v1802 = vpack.c.bf16 %v1793, %v1792
    %v1803 = vpack.c.bf16 %v1795, %v1794
    %v1804 = vld [vmem:[%s12] sm:$0x1]
    %v1805 = vld [vmem:[#allocation16] sm:$0xf]
    %v1806 = vld [vmem:[#allocation16 + $0x4] sm:$0xf]
    %v1807 = vld [vmem:[#allocation16 + $0x8] sm:$0xf]
    %v1808 = vld [vmem:[#allocation16 + $0xc] sm:$0xf]
    %v1809 = vld [vmem:[#allocation16 + $0x10] sm:$0xf]
    %v1810 = vld [vmem:[#allocation16 + $0x14] sm:$0xf]
    %v1811 = vld [vmem:[#allocation16 + $0x18] sm:$0xf]
    %v1812 = vld [vmem:[#allocation16 + $0x1c] sm:$0xf]
    %v1813 = vld [vmem:[#allocation16 + $0x20] sm:$0xf]
    %v1814 = vld [vmem:[#allocation16 + $0x24] sm:$0xf]
    %v1815 = vld [vmem:[#allocation16 + $0x28] sm:$0xf]
    %v1816 = vld [vmem:[#allocation16 + $0x2c] sm:$0xf]
    %v1817 = vld [vmem:[#allocation16 + $0x30] sm:$0xf]
    %v1818 = vld [vmem:[#allocation16 + $0x34] sm:$0xf]
    %v1819 = vld [vmem:[#allocation16 + $0x38] sm:$0xf]
    %v1820 = vld [vmem:[#allocation16 + $0x3c] sm:$0xf]
    %v1822 = vperm.slane %v1804, 0
    %v1840 = vunpack.c.l.b16 %v1805
    %v1841 = vunpack.c.l.b16 %v1806
    %v1842 = vunpack.c.l.b16 %v1807
    %v1843 = vunpack.c.l.b16 %v1808
    %v1844 = vunpack.c.l.b16 %v1809
    %v1845 = vunpack.c.l.b16 %v1810
    %v1846 = vunpack.c.l.b16 %v1811
    %v1847 = vunpack.c.l.b16 %v1812
    %v1848 = vunpack.c.l.b16 %v1813
    %v1849 = vunpack.c.l.b16 %v1814
    %v1850 = vunpack.c.l.b16 %v1815
    %v1851 = vunpack.c.l.b16 %v1816
    %v1852 = vunpack.c.l.b16 %v1817
    %v1853 = vunpack.c.l.b16 %v1818
    %v1854 = vunpack.c.l.b16 %v1819
    %v1855 = vunpack.c.l.b16 %v1820
    %v1856 = vpack.c.b16 %v1841, %v1840
    %v1857 = vpack.c.b16 %v1843, %v1842
    %v1858 = vpack.c.b16 %v1845, %v1844
    %v1859 = vpack.c.b16 %v1847, %v1846
    %v1860 = vpack.c.b16 %v1849, %v1848
    %v1861 = vpack.c.b16 %v1851, %v1850
    %v1862 = vpack.c.b16 %v1853, %v1852
    %v1863 = vpack.c.b16 %v1855, %v1854
    %1872 = vmatpush.bf16.msra.mxu0 %v1863
    %1873 = vmatpush.bf16.msra.mxu0 %v1862
    %1874 = vmatpush.bf16.msra.mxu0 %v1861
    %1875 = vmatpush.bf16.msra.mxu0 %v1860
    %1876 = vmatpush.bf16.msra.mxu0 %v1859
    %1877 = vmatpush.bf16.msra.mxu0 %v1858
    %1878 = vmatpush.bf16.msra.mxu0 %v1857
    %1879 = vmatpush.bf16.msra.mxu0 %v1856
    %1880 = vmatmul.bf16.gmra.mxu0 %v1796
    %v1881 = vpop.f32.mrf.mxu0
    %v1882 = vadd.f32 %v1822, %v1881
    %v1883 = vpop.f32.mrf.mxu0
    %v1884 = vadd.f32 %v1822, %v1883
    %1885 = vmatmul.bf16.gmra.mxu0 %v1797
    %v1886 = vpop.f32.mrf.mxu0
    %v1887 = vadd.f32 %v1822, %v1886
    %v1888 = vpop.f32.mrf.mxu0
    %v1889 = vadd.f32 %v1822, %v1888
    %1890 = vmatmul.bf16.gmra.mxu0 %v1798
    %v1891 = vpop.f32.mrf.mxu0
    %v1892 = vadd.f32 %v1822, %v1891
    %v1893 = vpop.f32.mrf.mxu0
    %v1894 = vadd.f32 %v1822, %v1893
    %1895 = vmatmul.bf16.gmra.mxu0 %v1799
    %v1896 = vpop.f32.mrf.mxu0
    %v1897 = vadd.f32 %v1822, %v1896
    %v1898 = vpop.f32.mrf.mxu0
    %v1899 = vadd.f32 %v1822, %v1898
    %1900 = vmatmul.bf16.gmra.mxu0 %v1800
    %v1901 = vpop.f32.mrf.mxu0
    %v1902 = vadd.f32 %v1822, %v1901
    %v1903 = vpop.f32.mrf.mxu0
    %v1904 = vadd.f32 %v1822, %v1903
    %1905 = vmatmul.bf16.gmra.mxu0 %v1801
    %v1906 = vpop.f32.mrf.mxu0
    %v1907 = vadd.f32 %v1822, %v1906
    %v1908 = vpop.f32.mrf.mxu0
    %v1909 = vadd.f32 %v1822, %v1908
    %1910 = vmatmul.bf16.gmra.mxu0 %v1802
    %v1911 = vpop.f32.mrf.mxu0
    %v1912 = vadd.f32 %v1822, %v1911
    %v1913 = vpop.f32.mrf.mxu0
    %v1914 = vadd.f32 %v1822, %v1913
    %1915 = vmatmul.bf16.gmra.mxu0 %v1803
    %v1916 = vpop.f32.mrf.mxu0
    %v1917 = vadd.f32 %v1822, %v1916
    %v1918 = vpop.f32.mrf.mxu0
    %v1919 = vadd.f32 %v1822, %v1918
    %1920 = vdwg.mxu0
    %1921 = vst [vmem:[#allocation17] sm:$0xff] %v1882
    %1922 = vst [vmem:[#allocation17 + $0x8] sm:$0xff] %v1884
    %1923 = vst [vmem:[#allocation17 + $0x10] sm:$0xff] %v1887
    %1924 = vst [vmem:[#allocation17 + $0x18] sm:$0xff] %v1889
    %1925 = vst [vmem:[#allocation17 + $0x20] sm:$0xff] %v1892
    %1926 = vst [vmem:[#allocation17 + $0x28] sm:$0xff] %v1894
    %1927 = vst [vmem:[#allocation17 + $0x30] sm:$0xff] %v1897
    %1928 = vst [vmem:[#allocation17 + $0x38] sm:$0xff] %v1899
    %1929 = vst [vmem:[#allocation17 + $0x40] sm:$0xff] %v1902
    %1930 = vst [vmem:[#allocation17 + $0x48] sm:$0xff] %v1904
    %1931 = vst [vmem:[#allocation17 + $0x50] sm:$0xff] %v1907
    %1932 = vst [vmem:[#allocation17 + $0x58] sm:$0xff] %v1909
    %1933 = vst [vmem:[#allocation17 + $0x60] sm:$0xff] %v1912
    %1934 = vst [vmem:[#allocation17 + $0x68] sm:$0xff] %v1914
    %1935 = vst [vmem:[#allocation17 + $0x70] sm:$0xff] %v1917
    %1936 = vst [vmem:[#allocation17 + $0x78] sm:$0xff] %v1919
    // Predicated region
    $region90: #{tpu_custom_call.1} parent=1 // pred_check
      _
    $region91: #{tpu_custom_call.1} parent=1 // pred_check_branch
      %1938 = sbr.rel (0) target = $region93
    $region92: #{tpu_custom_call.1} parent=1 // pred_region
      %1940 = vsyncadd [#allocation4], 0
      %s1941 = sshll.u32 [#allocation17], 4
      %s1942 = int_to_ptr.vmem [resolvable:$true] %s1941
      %s1943 = sshll.u32 %s13, 4
      %s1944 = int_to_ptr.hbm [resolvable:$true] %s1943
      %1949 = dma.vmem_to_hbm [thread:$0]  %s1942, 2048, %s1944, [#allocation4], 128, 128, 8
    $region93: #{tpu_custom_call.1} parent=1 // pred_fallthru
      _
    // Predicated region
    $region94: #{tpu_custom_call.1} parent=1 // pred_check
      _
    $region95: #{tpu_custom_call.1} parent=1 // pred_check_branch
      %1951 = sbr.rel (0) target = $region97
    $region96: #{tpu_custom_call.1} parent=1 // pred_region
      %1953 = dma.done [#allocation4], 2048
    $region97: #{tpu_custom_call.1} parent=1 // pred_fallthru
      _
    %1954 = vsyncpa [#allocation3], 1
    %1955 = vsyncpa [#allocation6], 1
    %1956 = vsyncpa [#allocation9], 1
    %1957 = vsyncpa [#allocation12], 1
    %1958 = vsyncpa [#allocation15], 1
    %1959 = vsyncpa [#allocation4], 1

</llo_original>
